<compile_context>
chip_gen: v7x
topology: tpu7x:2x2x1
jax: 0.10.0
libtpu: 0.0.40
codegen_flags: <defaults>
</compile_context>

<pallas_src>
import functools

import jax
import jax.numpy as jnp
from jax.experimental import pallas as pl
from jax.experimental.pallas import tpu as pltpu

_NEG_BIG = -1e30


# ------------------------------ fused kernel ---------------------------------

def _gat_fused_kernel(
    x_ref, xw_ref, xb_ref,
    wsrc_ref, wdst_ref, wrel_ref,
    ohrel_ref, ohsrcT_ref,
    gamma_ref, beta_ref,
    o_ref,
    x_scratch,
    *, k_top, slope, ln_eps, apply_elu,
):
    layer = pl.program_id(0)
    last = pl.num_programs(0) - 1
    F = x_scratch.shape[1]

    # ---- layer 0: x_cur = x @ xw + xb  (nn.Linear), kept in VMEM scratch ----
    @pl.when(layer == 0)
    def _():
        x_scratch[...] = (
            jnp.dot(x_ref[...], xw_ref[...], preferred_element_type=jnp.float32)
            + xb_ref[...]
        )

    x_bf = x_scratch[...].astype(jnp.bfloat16)                        # (N, F)

    # node projections; the LAST column of each weight block is W@a (folded
    # attention vector), so the logit appears as column F of edge_aug below.
    xs_a = jnp.dot(x_bf, wsrc_ref[0], preferred_element_type=jnp.float32)  # (N, F+1)
    xd_a = jnp.dot(x_bf, wdst_ref[0], preferred_element_type=jnp.float32)  # (N, F+1)

    # single fused gather+relation matmul (replaces two (E,N)@(N,F) gathers
    # plus a separate relp matmul and the logit reduction):
    #   edge_aug = [oh_srcT | oh_dstT | rel] @ [xs_a ; xd_a ; W_rel_a]
    rhs = jnp.concatenate(
        [xs_a.astype(jnp.bfloat16), xd_a.astype(jnp.bfloat16), wrel_ref[0]],
        axis=0)                                                       # (2N+D, F+1)
    edge_aug = jnp.dot(ohrel_ref[...], rhs,
                       preferred_element_type=jnp.float32)            # (E, F+1)
    edge_h = edge_aug[:, :F]                                          # (E, F)
    z = edge_aug[:, F:]                                               # (E, 1)
    logit = jnp.where(z >= 0.0, z, slope * z)                         # LeakyReLU

    # segment softmax over source-node groups (torch_geometric.utils.softmax)
    oh_src = ohsrcT_ref[...].astype(jnp.float32)                      # (E, N)
    scores = jnp.where(oh_src > 0.0, logit, _NEG_BIG)                 # (E, N)
    seg_max = jnp.max(scores, axis=0, keepdims=True)                  # (1, N)
    edge_max = jnp.sum(oh_src * seg_max, axis=-1, keepdims=True)      # (E, 1)
    e_exp = jnp.exp(logit - edge_max)                                 # (E, 1)
    seg_sum = jnp.sum(oh_src * e_exp, axis=0, keepdims=True)          # (1, N)
    edge_sum = jnp.sum(oh_src * seg_sum, axis=-1, keepdims=True)      # (E, 1)
    alpha = e_exp * pl.reciprocal(edge_sum + 1e-16, approx=True)      # (E, 1)

    # global top-k mask: rank edges by an index-tiebroken alpha (lower index
    # wins ties); a single (E,E) compare keeps live (E,E) temporaries at ~2.
    E = alpha.shape[0]
    idx_col = jax.lax.broadcasted_iota(jnp.int32, (E, 1), 0).astype(jnp.float32)
    alpha_tb = alpha - 1e-6 * idx_col                                 # (E, 1)
    # row form of alpha_tb via eye-mask + sublane reduce (Mosaic-safe).
    eye = (jax.lax.broadcasted_iota(jnp.int32, (E, E), 0)
           == jax.lax.broadcasted_iota(jnp.int32, (E, E), 1))
    alpha_row = jnp.sum(jnp.where(eye, alpha_tb, 0.0),
                        axis=0, keepdims=True)                        # (1, E)
    rank = jnp.sum((alpha_row > alpha_tb).astype(jnp.float32),
                   axis=-1, keepdims=True)                            # (E, 1)
    alpha_masked = jnp.where(rank < float(k_top), alpha, 0.0)

    # path_message: out[n] = sum_e [src[e]==n] * alpha[e] * edge_h[e]
    # transposed-LHS matmul on oh_srcT (no separate (N,E) one-hot needed).
    msg = (alpha_masked * edge_h).astype(jnp.bfloat16)                # (E, F)
    x_scratch[...] = jax.lax.dot_general(
        ohsrcT_ref[...], msg,
        dimension_numbers=(((0,), (0,)), ((), ())),
        preferred_element_type=jnp.float32)                           # (N, F)

    # fused epilogue on the final layer: (ELU) + LayerNorm
    @pl.when(layer == last)
    def _():
        y = x_scratch[...]
        if apply_elu:
            # ELU(1): expm1(y) for y<=0 computed stably via tanh (EUP op):
            #   expm1(y) = 2*t / (1-t),  t = tanh(y/2)
            t = jnp.tanh(0.5 * y)
            y = jnp.where(y > 0.0, y,
                          2.0 * t * pl.reciprocal(1.0 - t, approx=True))
        mean = jnp.mean(y, axis=-1, keepdims=True)
        var = jnp.mean(jnp.square(y - mean), axis=-1, keepdims=True)
        yn = (y - mean) * jax.lax.rsqrt(var + ln_eps)
        o_ref[...] = yn * gamma_ref[...] + beta_ref[...]


# ---------------------------- pallas_call wrapper -----------------------------

def gat_forward_pallas(x, xw, xb, W, a, edge_type_embed, src, dst, gamma, beta,
                       *, k_top, slope, ln_eps, apply_elu):
    N, Fin = x.shape
    Fout = xw.shape[1]
    E, D = edge_type_embed.shape
    L = W.shape[0]                                     # 4 aggregation layers
    Fp = Fout + 1                                      # +1 folded `a` column

    # split the concat-weight and fold `a` in as an extra output column:
    #   cat(xs, xd, rel) @ W    == xs@Ws + xd@Wd + rel@Wr
    #   (cat(...) @ W) @ a      == xs@(Ws@a) + xd@(Wd@a) + rel@(Wr@a)
    w_src = W[:, :Fout, :]                             # (L, F, F)
    w_dst = W[:, Fout:2 * Fout, :]                     # (L, F, F)
    w_rel = W[:, 2 * Fout:, :]                         # (L, D, F)
    aug = lambda w: jnp.concatenate([w, jnp.matmul(w, a)], axis=-1)
    w_src_a = aug(w_src).astype(jnp.bfloat16)          # (L, F, F+1)
    w_dst_a = aug(w_dst).astype(jnp.bfloat16)          # (L, F, F+1)
    w_rel_a = aug(w_rel).astype(jnp.bfloat16)          # (L, D, F+1)

    # one-hot gathers (exact in bf16) + relation features fused into a single
    # resident gather LHS; built once, DMA'd once, no per-layer casts.
    node_ids = jnp.arange(N, dtype=src.dtype)
    oh_srcT = (src[:, None] == node_ids[None, :]).astype(jnp.bfloat16)   # (E, N)
    oh_dstT = (dst[:, None] == node_ids[None, :]).astype(jnp.bfloat16)   # (E, N)
    oh_rel = jnp.concatenate(
        [oh_srcT, oh_dstT, edge_type_embed.astype(jnp.bfloat16)], axis=1)  # (E, 2N+D)

    def const(shape):                                  # resident: DMA'd once
        n = len(shape)
        return pl.BlockSpec(shape, lambda i, _n=n: (0,) * _n)

    def per_layer(shape):                              # new block each layer
        n = len(shape)
        return pl.BlockSpec((1,) + shape, lambda i, _n=n: (i,) + (0,) * _n)

    kernel = functools.partial(_gat_fused_kernel, k_top=k_top, slope=slope,
                               ln_eps=ln_eps, apply_elu=apply_elu)
    return pl.pallas_call(
        kernel,
        out_shape=jax.ShapeDtypeStruct((N, Fout), jnp.float32),
        grid=(L,),
        in_specs=[
            const((N, Fin)),            # x                     (bf16)
            const((Fin, Fout)),         # x_linear weight       (bf16)
            const((1, Fout)),           # x_linear bias         (f32)
            per_layer((Fout, Fp)),      # [W_src | W_src@a]     (bf16)
            per_layer((Fout, Fp)),      # [W_dst | W_dst@a]     (bf16)
            per_layer((D, Fp)),         # [W_rel | W_rel@a]     (bf16)
            const((E, 2 * N + D)),      # [oh_srcT|oh_dstT|rel] (bf16)
            const((E, N)),              # oh_srcT               (bf16)
            const((1, Fout)),           # LN gamma
            const((1, Fout)),           # LN beta
        ],
        out_specs=const((N, Fout)),
        scratch_shapes=[pltpu.VMEM((N, Fout), jnp.float32)],   # x_cur carry
        compiler_params=pltpu.CompilerParams(
            dimension_semantics=("arbitrary",)),   # layers are sequential
    )(x.astype(jnp.bfloat16), xw.astype(jnp.bfloat16), xb,
      w_src_a, w_dst_a, w_rel_a, oh_rel, oh_srcT, gamma, beta)


# ------------------------------- GATLayer -------------------------------------

class GATLayerPallas:
    def __init__(self, num_nodes, in_features, out_features, nrela_dim,
                 dropout, alpha, concat=True, *, key):
        self.num_nodes = num_nodes
        self.in_features = in_features
        self.out_features = out_features
        self.nrela_dim = nrela_dim
        self.alpha = float(alpha)      # LeakyReLU negative slope
        self.concat = concat
        self.ln_eps = 1e-5

        k_w, k_a, k_xw, k_xb = jax.random.split(key, 4)
        d_in = 2 * out_features + nrela_dim
        # get_param -> xavier-style normal init (deterministic, synthetic)
        self.W = jax.random.normal(k_w, (4, d_in, out_features), jnp.float32) * \
            (2.0 / (d_in + out_features)) ** 0.5
        self.a = jax.random.normal(k_a, (4, out_features, 1), jnp.float32) * \
            (2.0 / (out_features + 1)) ** 0.5
        # nn.Linear default: U(-1/sqrt(in), 1/sqrt(in)); stored as (in, out)
        bound = 1.0 / (in_features ** 0.5)
        self.xw = jax.random.uniform(k_xw, (in_features, out_features),
                                     jnp.float32, -bound, bound)
        self.xb = jax.random.uniform(k_xb, (out_features,), jnp.float32,
                                     -bound, bound)
        # LayerNorm params
        self.ln_gamma = jnp.ones((out_features,), jnp.float32)
        self.ln_beta = jnp.zeros((out_features,), jnp.float32)

    def __call__(self, edge_index, x, edge_type_embed, ratio):
        assert isinstance(ratio, float)
        E = edge_type_embed.shape[0]
        k_top = int(E * ratio)   # static, as in the reference topk size
        return gat_forward_pallas(
            x, self.xw, self.xb.reshape(1, -1), self.W, self.a,
            edge_type_embed, edge_index[0], edge_index[1],
            self.ln_gamma.reshape(1, -1), self.ln_beta.reshape(1, -1),
            k_top=k_top, slope=self.alpha, ln_eps=self.ln_eps,
            apply_elu=self.concat)


# --------------------------------- main ----------------------------------------

if __name__ == "__main__":
    key = jax.random.PRNGKey(0)
    k_param, k_x, k_rel, k_src, k_dst = jax.random.split(key, 5)

    num_nodes = 16
    in_features = 32
    out_features = 32
    nrela_dim = 16
    num_edges = 128          # lane-dense edge axis
    leaky_alpha = 0.2
    ratio = 0.5

    layer = GATLayerPallas(num_nodes, in_features, out_features, nrela_dim,
                           dropout=0.0, alpha=leaky_alpha, concat=True,
                           key=k_param)

    x = jax.random.normal(k_x, (num_nodes, in_features), jnp.float32)
    edge_type_embed = jax.random.normal(k_rel, (num_edges, nrela_dim), jnp.float32)
    src = jax.random.randint(k_src, (num_edges,), 0, num_nodes, jnp.int32)
    dst = jax.random.randint(k_dst, (num_edges,), 0, num_nodes, jnp.int32)
    edge_index = jnp.stack([src, dst], axis=0)

    out = layer(edge_index, x, edge_type_embed, ratio)
    out = jax.block_until_ready(out)

    assert out.shape == (num_nodes, out_features)
    assert bool(jnp.all(jnp.isfinite(out)))
    print("KERNEL_OK")
</pallas_src>

<mosaic_0001>
module attributes {stable_mosaic.version = 11 : i64} {
  func.func @_gat_fused_kernel(%arg0: i32, %arg1: memref<16x32xbf16, #tpu.memory_space<vmem>>, %arg2: memref<32x32xbf16, #tpu.memory_space<vmem>>, %arg3: memref<1x32xf32, #tpu.memory_space<vmem>>, %arg4: memref<1x32x33xbf16, #tpu.memory_space<vmem>>, %arg5: memref<1x32x33xbf16, #tpu.memory_space<vmem>>, %arg6: memref<1x16x33xbf16, #tpu.memory_space<vmem>>, %arg7: memref<128x48xbf16, #tpu.memory_space<vmem>>, %arg8: memref<128x16xbf16, #tpu.memory_space<vmem>>, %arg9: memref<1x32xf32, #tpu.memory_space<vmem>>, %arg10: memref<1x32xf32, #tpu.memory_space<vmem>>, %arg11: memref<16x32xf32, #tpu.memory_space<vmem>>, %arg12: memref<16x32xf32, #tpu.memory_space<vmem>>) attributes {dimension_semantics = [#tpu.dimension_semantics<arbitrary>], iteration_bounds = array<i64: 4>, scalar_prefetch = 0 : i64, scratch_operands = 1 : i64, tpu.core_type = #tpu.core_type<tc>, window_params = [{pipeline_mode = #tpu.pipeline_mode<synchronous>, transform_indices = @transform_0, window_bounds = array<i64: 16, 32>}, {pipeline_mode = #tpu.pipeline_mode<synchronous>, transform_indices = @transform_1, window_bounds = array<i64: 32, 32>}, {pipeline_mode = #tpu.pipeline_mode<synchronous>, transform_indices = @transform_2, window_bounds = array<i64: 1, 32>}, {transform_indices = @transform_3, window_bounds = array<i64: 1, 32, 33>}, {transform_indices = @transform_4, window_bounds = array<i64: 1, 32, 33>}, {transform_indices = @transform_5, window_bounds = array<i64: 1, 16, 33>}, {pipeline_mode = #tpu.pipeline_mode<synchronous>, transform_indices = @transform_6, window_bounds = array<i64: 128, 48>}, {pipeline_mode = #tpu.pipeline_mode<synchronous>, transform_indices = @transform_7, window_bounds = array<i64: 128, 16>}, {pipeline_mode = #tpu.pipeline_mode<synchronous>, transform_indices = @transform_8, window_bounds = array<i64: 1, 32>}, {pipeline_mode = #tpu.pipeline_mode<synchronous>, transform_indices = @transform_9, window_bounds = array<i64: 1, 32>}, {pipeline_mode = #tpu.pipeline_mode<synchronous>, transform_indices = @transform_10, window_bounds = array<i64: 16, 32>}]} {
    %c0_i32 = arith.constant 0 : i32
    %0 = arith.cmpi eq, %arg0, %c0_i32 : i32
    %1 = arith.extui %0 : i1 to i32
    %c0_i32_0 = arith.constant 0 : i32
    %2 = arith.cmpi ne, %1, %c0_i32_0 : i32
    scf.if %2 {
      %c0_38 = arith.constant 0 : index
      %c0_39 = arith.constant 0 : index
      %87 = vector.load %arg1[%c0_38, %c0_39] : memref<16x32xbf16, #tpu.memory_space<vmem>>, vector<16x32xbf16>
      %c0_40 = arith.constant 0 : index
      %c0_41 = arith.constant 0 : index
      %88 = vector.load %arg2[%c0_40, %c0_41] : memref<32x32xbf16, #tpu.memory_space<vmem>>, vector<32x32xbf16>
      %cst_42 = arith.constant dense<0.000000e+00> : vector<16x32xf32>
      %89 = tpu.matmul %87, %88, %cst_42 {dimension_numbers = #tpu.dot_dimension_numbers<[1], [0], [0], [1], [0, 0, 1, 1], [], []>} : vector<16x32xbf16>, vector<32x32xbf16>, vector<16x32xf32> -> vector<16x32xf32>
      %c0_43 = arith.constant 0 : index
      %c0_44 = arith.constant 0 : index
      %90 = vector.load %arg3[%c0_43, %c0_44] : memref<1x32xf32, #tpu.memory_space<vmem>>, vector<1x32xf32>
      %91 = vector.broadcast %90 : vector<1x32xf32> to vector<16x32xf32>
      %92 = arith.addf %89, %91 : vector<16x32xf32>
      %c0_45 = arith.constant 0 : index
      %c0_46 = arith.constant 0 : index
      %93 = vector.load %arg12[%c0_45, %c0_46] : memref<16x32xf32, #tpu.memory_space<vmem>>, vector<16x32xf32>
      tpu.vector_store %arg12[%c0_45, %c0_46], %92 {strides = array<i32>} : memref<16x32xf32, #tpu.memory_space<vmem>>, vector<16x32xf32>,
    } else {
    }
    %c0 = arith.constant 0 : index
    %c0_1 = arith.constant 0 : index
    %3 = vector.load %arg12[%c0, %c0_1] : memref<16x32xf32, #tpu.memory_space<vmem>>, vector<16x32xf32>
    %4 = arith.truncf %3 : vector<16x32xf32> to vector<16x32xbf16>
    %c0_2 = arith.constant 0 : index
    %c0_3 = arith.constant 0 : index
    %c0_4 = arith.constant 0 : index
    %5 = vector.load %arg4[%c0_2, %c0_3, %c0_4] : memref<1x32x33xbf16, #tpu.memory_space<vmem>>, vector<1x32x33xbf16>
    %6 = vector.shape_cast %5 : vector<1x32x33xbf16> to vector<32x33xbf16>
    %cst = arith.constant dense<0.000000e+00> : vector<16x33xf32>
    %7 = tpu.matmul %4, %6, %cst {dimension_numbers = #tpu.dot_dimension_numbers<[1], [0], [0], [1], [0, 0, 1, 1], [], []>} : vector<16x32xbf16>, vector<32x33xbf16>, vector<16x33xf32> -> vector<16x33xf32>
    %c0_5 = arith.constant 0 : index
    %c0_6 = arith.constant 0 : index
    %c0_7 = arith.constant 0 : index
    %8 = vector.load %arg5[%c0_5, %c0_6, %c0_7] : memref<1x32x33xbf16, #tpu.memory_space<vmem>>, vector<1x32x33xbf16>
    %9 = vector.shape_cast %8 : vector<1x32x33xbf16> to vector<32x33xbf16>
    %cst_8 = arith.constant dense<0.000000e+00> : vector<16x33xf32>
    %10 = tpu.matmul %4, %9, %cst_8 {dimension_numbers = #tpu.dot_dimension_numbers<[1], [0], [0], [1], [0, 0, 1, 1], [], []>} : vector<16x32xbf16>, vector<32x33xbf16>, vector<16x33xf32> -> vector<16x33xf32>
    %11 = arith.truncf %7 : vector<16x33xf32> to vector<16x33xbf16>
    %12 = arith.truncf %10 : vector<16x33xf32> to vector<16x33xbf16>
    %c0_9 = arith.constant 0 : index
    %c0_10 = arith.constant 0 : index
    %c0_11 = arith.constant 0 : index
    %13 = vector.load %arg6[%c0_9, %c0_10, %c0_11] : memref<1x16x33xbf16, #tpu.memory_space<vmem>>, vector<1x16x33xbf16>
    %14 = vector.shape_cast %13 : vector<1x16x33xbf16> to vector<16x33xbf16>
    %15 = tpu.concatenate %11, %12, %14 in 0 : vector<16x33xbf16>, vector<16x33xbf16>, vector<16x33xbf16> -> vector<48x33xbf16>
    %c0_12 = arith.constant 0 : index
    %c0_13 = arith.constant 0 : index
    %16 = vector.load %arg7[%c0_12, %c0_13] : memref<128x48xbf16, #tpu.memory_space<vmem>>, vector<128x48xbf16>
    %cst_14 = arith.constant dense<0.000000e+00> : vector<128x33xf32>
    %17 = tpu.matmul %16, %15, %cst_14 {dimension_numbers = #tpu.dot_dimension_numbers<[1], [0], [0], [1], [0, 0, 1, 1], [], []>} : vector<128x48xbf16>, vector<48x33xbf16>, vector<128x33xf32> -> vector<128x33xf32>
    %18 = vector.extract_strided_slice %17 {offsets = [0, 0], sizes = [128, 32], strides = [1, 1]} : vector<128x33xf32> to vector<128x32xf32>
    %19 = vector.extract_strided_slice %17 {offsets = [0, 32], sizes = [128, 1], strides = [1, 1]} : vector<128x33xf32> to vector<128x1xf32>
    %cst_15 = arith.constant 0.000000e+00 : f32
    %20 = vector.broadcast %cst_15 : f32 to vector<128x1xf32>
    %21 = arith.cmpf oge, %19, %20 : vector<128x1xf32>
    %cst_16 = arith.constant 2.000000e-01 : f32
    %22 = vector.broadcast %cst_16 : f32 to vector<128x1xf32>
    %23 = arith.mulf %22, %19 : vector<128x1xf32>
    %24 = arith.select %21, %19, %23 : vector<128x1xi1>, vector<128x1xf32>
    %c0_17 = arith.constant 0 : index
    %c0_18 = arith.constant 0 : index
    %25 = vector.load %arg8[%c0_17, %c0_18] : memref<128x16xbf16, #tpu.memory_space<vmem>>, vector<128x16xbf16>
    %26 = arith.extf %25 : vector<128x16xbf16> to vector<128x16xf32>
    %cst_19 = arith.constant 0.000000e+00 : f32
    %27 = vector.broadcast %cst_19 : f32 to vector<128x16xf32>
    %28 = arith.cmpf ogt, %26, %27 : vector<128x16xf32>
    %cst_20 = arith.constant -1.000000e+30 : f32
    %29 = vector.shape_cast %24 : vector<128x1xf32> to vector<128x1xf32>
    %30 = vector.broadcast %29 : vector<128x1xf32> to vector<128x16xf32>
    %31 = vector.broadcast %cst_20 : f32 to vector<128x16xf32>
    %32 = arith.select %28, %30, %31 : vector<128x16xi1>, vector<128x16xf32>
    %cst_21 = arith.constant dense<0xFF800000> : vector<16xf32>
    %33 = vector.multi_reduction <maximumf>, %32, %cst_21 [0] : vector<128x16xf32> to vector<16xf32>
    %34 = vector.shape_cast %33 : vector<16xf32> to vector<1x16xf32>
    %35 = vector.broadcast %34 : vector<1x16xf32> to vector<128x16xf32>
    %36 = arith.mulf %26, %35 : vector<128x16xf32>
    %cst_22 = arith.constant dense<0.000000e+00> : vector<128xf32>
    %37 = vector.multi_reduction <add>, %36, %cst_22 [1] : vector<128x16xf32> to vector<128xf32>
    %38 = vector.shape_cast %37 : vector<128xf32> to vector<128x1xf32>
    %39 = arith.subf %24, %38 : vector<128x1xf32>
    %40 = math.exp %39 : vector<128x1xf32>
    %41 = vector.broadcast %40 : vector<128x1xf32> to vector<128x16xf32>
    %42 = arith.mulf %26, %41 : vector<128x16xf32>
    %cst_23 = arith.constant dense<0.000000e+00> : vector<16xf32>
    %43 = vector.multi_reduction <add>, %42, %cst_23 [0] : vector<128x16xf32> to vector<16xf32>
    %44 = vector.shape_cast %43 : vector<16xf32> to vector<1x16xf32>
    %45 = vector.broadcast %44 : vector<1x16xf32> to vector<128x16xf32>
    %46 = arith.mulf %26, %45 : vector<128x16xf32>
    %cst_24 = arith.constant dense<0.000000e+00> : vector<128xf32>
    %47 = vector.multi_reduction <add>, %46, %cst_24 [1] : vector<128x16xf32> to vector<128xf32>
    %48 = vector.shape_cast %47 : vector<128xf32> to vector<128x1xf32>
    %cst_25 = arith.constant 1.000000e-16 : f32
    %49 = vector.broadcast %cst_25 : f32 to vector<128x1xf32>
    %50 = arith.addf %48, %49 : vector<128x1xf32>
    %51 = tpu.reciprocal %50 {approx = true} : vector<128x1xf32> -> vector<128x1xf32>
    %52 = arith.mulf %40, %51 : vector<128x1xf32>
    %53 = tpu.iota {dimensions = array<i32: 0>} : vector<128x1xi32>
    %54 = arith.sitofp %53 : vector<128x1xi32> to vector<128x1xf32>
    %cst_26 = arith.constant 9.99999997E-7 : f32
    %55 = vector.broadcast %cst_26 : f32 to vector<128x1xf32>
    %56 = arith.mulf %55, %54 : vector<128x1xf32>
    %57 = arith.subf %52, %56 : vector<128x1xf32>
    %58 = tpu.iota {dimensions = array<i32: 0>} : vector<128x128xi32>
    %59 = tpu.iota {dimensions = array<i32: 1>} : vector<128x128xi32>
    %60 = arith.cmpi eq, %58, %59 : vector<128x128xi32>
    %cst_27 = arith.constant 0.000000e+00 : f32
    %61 = vector.shape_cast %57 : vector<128x1xf32> to vector<128x1xf32>
    %62 = vector.broadcast %61 : vector<128x1xf32> to vector<128x128xf32>
    %63 = vector.broadcast %cst_27 : f32 to vector<128x128xf32>
    %64 = arith.select %60, %62, %63 : vector<128x128xi1>, vector<128x128xf32>
    %cst_28 = arith.constant dense<0.000000e+00> : vector<128xf32>
    %65 = vector.multi_reduction <add>, %64, %cst_28 [0] : vector<128x128xf32> to vector<128xf32>
    %66 = vector.shape_cast %65 : vector<128xf32> to vector<1x128xf32>
    %67 = vector.broadcast %66 : vector<1x128xf32> to vector<128x128xf32>
    %68 = vector.broadcast %57 : vector<128x1xf32> to vector<128x128xf32>
    %69 = arith.cmpf ogt, %67, %68 : vector<128x128xf32>
    %70 = arith.extui %69 : vector<128x128xi1> to vector<128x128xi32>
    %71 = arith.sitofp %70 : vector<128x128xi32> to vector<128x128xf32>
    %cst_29 = arith.constant dense<0.000000e+00> : vector<128xf32>
    %72 = vector.multi_reduction <add>, %71, %cst_29 [1] : vector<128x128xf32> to vector<128xf32>
    %73 = vector.shape_cast %72 : vector<128xf32> to vector<128x1xf32>
    %cst_30 = arith.constant 6.400000e+01 : f32
    %74 = vector.broadcast %cst_30 : f32 to vector<128x1xf32>
    %75 = arith.cmpf olt, %73, %74 : vector<128x1xf32>
    %cst_31 = arith.constant 0.000000e+00 : f32
    %76 = vector.broadcast %cst_31 : f32 to vector<128x1xf32>
    %77 = arith.select %75, %52, %76 : vector<128x1xi1>, vector<128x1xf32>
    %78 = vector.broadcast %77 : vector<128x1xf32> to vector<128x32xf32>
    %79 = arith.mulf %78, %18 : vector<128x32xf32>
    %80 = arith.truncf %79 : vector<128x32xf32> to vector<128x32xbf16>
    %c0_32 = arith.constant 0 : index
    %c0_33 = arith.constant 0 : index
    %81 = vector.load %arg8[%c0_32, %c0_33] : memref<128x16xbf16, #tpu.memory_space<vmem>>, vector<128x16xbf16>
    %cst_34 = arith.constant dense<0.000000e+00> : vector<16x32xf32>
    %82 = tpu.matmul %81, %80, %cst_34 {dimension_numbers = #tpu.dot_dimension_numbers<[0], [0], [1], [1], [0, 1, 1, 1], [], []>} : vector<128x16xbf16>, vector<128x32xbf16>, vector<16x32xf32> -> vector<16x32xf32>
    %c0_35 = arith.constant 0 : index
    %c0_36 = arith.constant 0 : index
    %83 = vector.load %arg12[%c0_35, %c0_36] : memref<16x32xf32, #tpu.memory_space<vmem>>, vector<16x32xf32>
    tpu.vector_store %arg12[%c0_35, %c0_36], %82 {strides = array<i32>} : memref<16x32xf32, #tpu.memory_space<vmem>>, vector<16x32xf32>,
    %c3_i32 = arith.constant 3 : i32
    %84 = arith.cmpi eq, %arg0, %c3_i32 : i32
    %85 = arith.extui %84 : i1 to i32
    %c0_i32_37 = arith.constant 0 : i32
    %86 = arith.cmpi ne, %85, %c0_i32_37 : i32
    scf.if %86 {
      %c0_38 = arith.constant 0 : index
      %c0_39 = arith.constant 0 : index
      %87 = vector.load %arg12[%c0_38, %c0_39] : memref<16x32xf32, #tpu.memory_space<vmem>>, vector<16x32xf32>
      %cst_40 = arith.constant 5.000000e-01 : f32
      %88 = vector.broadcast %cst_40 : f32 to vector<16x32xf32>
      %89 = arith.mulf %88, %87 : vector<16x32xf32>
      %90 = math.tanh %89 : vector<16x32xf32>
      %cst_41 = arith.constant 0.000000e+00 : f32
      %91 = vector.broadcast %cst_41 : f32 to vector<16x32xf32>
      %92 = arith.cmpf ogt, %87, %91 : vector<16x32xf32>
      %cst_42 = arith.constant 2.000000e+00 : f32
      %93 = vector.broadcast %cst_42 : f32 to vector<16x32xf32>
      %94 = arith.mulf %93, %90 : vector<16x32xf32>
      %cst_43 = arith.constant 1.000000e+00 : f32
      %95 = vector.broadcast %cst_43 : f32 to vector<16x32xf32>
      %96 = arith.subf %95, %90 : vector<16x32xf32>
      %97 = tpu.reciprocal %96 {approx = true} : vector<16x32xf32> -> vector<16x32xf32>
      %98 = arith.mulf %94, %97 : vector<16x32xf32>
      %99 = arith.select %92, %87, %98 : vector<16x32xi1>, vector<16x32xf32>
      %cst_44 = arith.constant dense<0.000000e+00> : vector<16xf32>
      %100 = vector.multi_reduction <add>, %99, %cst_44 [1] : vector<16x32xf32> to vector<16xf32>
      %101 = vector.shape_cast %100 : vector<16xf32> to vector<16x1xf32>
      %cst_45 = arith.constant 3.200000e+01 : f32
      %102 = vector.broadcast %cst_45 : f32 to vector<16x1xf32>
      %103 = arith.divf %101, %102 : vector<16x1xf32>
      %104 = vector.broadcast %103 : vector<16x1xf32> to vector<16x32xf32>
      %105 = arith.subf %99, %104 : vector<16x32xf32>
      %106 = arith.mulf %105, %105 : vector<16x32xf32>
      %cst_46 = arith.constant dense<0.000000e+00> : vector<16xf32>
      %107 = vector.multi_reduction <add>, %106, %cst_46 [1] : vector<16x32xf32> to vector<16xf32>
      %108 = vector.shape_cast %107 : vector<16xf32> to vector<16x1xf32>
      %cst_47 = arith.constant 3.200000e+01 : f32
      %109 = vector.broadcast %cst_47 : f32 to vector<16x1xf32>
      %110 = arith.divf %108, %109 : vector<16x1xf32>
      %111 = vector.broadcast %103 : vector<16x1xf32> to vector<16x32xf32>
      %112 = arith.subf %99, %111 : vector<16x32xf32>
      %cst_48 = arith.constant 9.99999974E-6 : f32
      %113 = vector.broadcast %cst_48 : f32 to vector<16x1xf32>
      %114 = arith.addf %110, %113 : vector<16x1xf32>
      %115 = math.rsqrt %114 : vector<16x1xf32>
      %116 = vector.broadcast %115 : vector<16x1xf32> to vector<16x32xf32>
      %117 = arith.mulf %112, %116 : vector<16x32xf32>
      %c0_49 = arith.constant 0 : index
      %c0_50 = arith.constant 0 : index
      %118 = vector.load %arg9[%c0_49, %c0_50] : memref<1x32xf32, #tpu.memory_space<vmem>>, vector<1x32xf32>
      %119 = vector.broadcast %118 : vector<1x32xf32> to vector<16x32xf32>
      %120 = arith.mulf %117, %119 : vector<16x32xf32>
      %c0_51 = arith.constant 0 : index
      %c0_52 = arith.constant 0 : index
      %121 = vector.load %arg10[%c0_51, %c0_52] : memref<1x32xf32, #tpu.memory_space<vmem>>, vector<1x32xf32>
      %122 = vector.broadcast %121 : vector<1x32xf32> to vector<16x32xf32>
      %123 = arith.addf %120, %122 : vector<16x32xf32>
      %c0_53 = arith.constant 0 : index
      %c0_54 = arith.constant 0 : index
      %124 = vector.load %arg11[%c0_53, %c0_54] : memref<16x32xf32, #tpu.memory_space<vmem>>, vector<16x32xf32>
      tpu.vector_store %arg11[%c0_53, %c0_54], %123 {strides = array<i32>} : memref<16x32xf32, #tpu.memory_space<vmem>>, vector<16x32xf32>,
    } else {
    }
    return
  }
  func.func @transform_0(%arg0: i32) -> (i32, i32) {
    %c0_i32 = arith.constant 0 : i32
    %c0_i32_0 = arith.constant 0 : i32
    %c0_i32_1 = arith.constant 0 : i32
    return %c0_i32, %c0_i32_0 : i32, i32
  }
  func.func @transform_1(%arg0: i32) -> (i32, i32) {
    %c0_i32 = arith.constant 0 : i32
    %c0_i32_0 = arith.constant 0 : i32
    %c0_i32_1 = arith.constant 0 : i32
    return %c0_i32, %c0_i32_0 : i32, i32
  }
  func.func @transform_2(%arg0: i32) -> (i32, i32) {
    %c0_i32 = arith.constant 0 : i32
    %c0_i32_0 = arith.constant 0 : i32
    %c0_i32_1 = arith.constant 0 : i32
    return %c0_i32, %c0_i32_0 : i32, i32
  }
  func.func @transform_3(%arg0: i32) -> (i32, i32, i32) {
    %c0_i32 = arith.constant 0 : i32
    %c0_i32_0 = arith.constant 0 : i32
    %c0_i32_1 = arith.constant 0 : i32
    return %arg0, %c0_i32, %c0_i32_0 : i32, i32, i32
  }
  func.func @transform_4(%arg0: i32) -> (i32, i32, i32) {
    %c0_i32 = arith.constant 0 : i32
    %c0_i32_0 = arith.constant 0 : i32
    %c0_i32_1 = arith.constant 0 : i32
    return %arg0, %c0_i32, %c0_i32_0 : i32, i32, i32
  }
  func.func @transform_5(%arg0: i32) -> (i32, i32, i32) {
    %c0_i32 = arith.constant 0 : i32
    %c0_i32_0 = arith.constant 0 : i32
    %c0_i32_1 = arith.constant 0 : i32
    return %arg0, %c0_i32, %c0_i32_0 : i32, i32, i32
  }
  func.func @transform_6(%arg0: i32) -> (i32, i32) {
    %c0_i32 = arith.constant 0 : i32
    %c0_i32_0 = arith.constant 0 : i32
    %c0_i32_1 = arith.constant 0 : i32
    return %c0_i32, %c0_i32_0 : i32, i32
  }
  func.func @transform_7(%arg0: i32) -> (i32, i32) {
    %c0_i32 = arith.constant 0 : i32
    %c0_i32_0 = arith.constant 0 : i32
    %c0_i32_1 = arith.constant 0 : i32
    return %c0_i32, %c0_i32_0 : i32, i32
  }
  func.func @transform_8(%arg0: i32) -> (i32, i32) {
    %c0_i32 = arith.constant 0 : i32
    %c0_i32_0 = arith.constant 0 : i32
    %c0_i32_1 = arith.constant 0 : i32
    return %c0_i32, %c0_i32_0 : i32, i32
  }
  func.func @transform_9(%arg0: i32) -> (i32, i32) {
    %c0_i32 = arith.constant 0 : i32
    %c0_i32_0 = arith.constant 0 : i32
    %c0_i32_1 = arith.constant 0 : i32
    return %c0_i32, %c0_i32_0 : i32, i32
  }
  func.func @transform_10(%arg0: i32) -> (i32, i32) {
    %c0_i32 = arith.constant 0 : i32
    %c0_i32_0 = arith.constant 0 : i32
    %c0_i32_1 = arith.constant 0 : i32
    return %c0_i32, %c0_i32_0 : i32, i32
  }
}

</mosaic_0001>

<llo_original>
// kernel: tpu_custom_call.1
$region0: #{tpu_custom_call.1}
  #allocation0 [shape = 'u32[]', space=smem, size = 0x4, offset = 0x4, fixed_abs, tag = 'smem constant byte address 0x4 - core index']
  #allocation1 [shape = 'u32[144,128]{1,0:T(1,128)}', space=vmem, size = 0x12000, scoped, tag = 'internal scratch']
  #allocation2 [shape = 'f32[16,32]{1,0:T(8,128)}', space=vmem, size = 0x2000, scoped, tag = 'scratch operand']
  %s0 = inlined_call_operand.hbm [shape: bf16[16,32], index: 0, kind: input, shape index: {}]
  %s1 = inlined_call_operand.hbm [shape: bf16[32,32], index: 1, kind: input, shape index: {}]
  %s2 = inlined_call_operand.vmem [shape: f32[1,32], index: 2, kind: input, shape index: {}]
  %s3 = inlined_call_operand.vmem [shape: bf16[4,32,33], index: 3, kind: input, shape index: {}]
  %s4 = inlined_call_operand.vmem [shape: bf16[4,32,33], index: 4, kind: input, shape index: {}]
  %s5 = inlined_call_operand.vmem [shape: bf16[4,16,33], index: 5, kind: input, shape index: {}]
  %s6 = inlined_call_operand.vmem [shape: bf16[128,48], index: 6, kind: input, shape index: {}]
  %s7 = inlined_call_operand.vmem [shape: bf16[128,16], index: 7, kind: input, shape index: {}]
  %s8 = inlined_call_operand.vmem [shape: f32[1,32], index: 8, kind: input, shape index: {}]
  %s9 = inlined_call_operand.vmem [shape: f32[1,32], index: 9, kind: input, shape index: {}]
  %s10 = inlined_call_operand.hbm [shape: f32[16,32], index: 10, kind: output, shape index: {}]
  %s11 = sld [smem:[#allocation0]]
  $region89: #{tpu_custom_call.1} parent=0
    _
  %s13 = ssub.s32 1, %s11
  %s14 = scalar_select 0, %s13, %s11
  $region1: #{tpu_custom_call.1} parent=0
    #allocation3 [shape = 'u8[4096]{0}', space=vmem, size = 0x1000, scoped, tag = 'input window, operand 0, single buffered']
    #allocation4 [shape = 's32[2]{0}', space=sflag, size = 0x8, scoped, tag = 'scoped memory for tpu_custom_call.1']
    #allocation5 [shape = 's32[2]{0}', space=sflag, size = 0x8, scoped, tag = 'scoped memory for tpu_custom_call.1']
    #allocation6 [shape = 'u8[8192]{0}', space=vmem, size = 0x2000, scoped, tag = 'input window, operand 1, single buffered']
    #allocation7 [shape = 's32[1]{0}', space=sflag, size = 0x4, scoped, tag = 'scoped memory for tpu_custom_call.1']
    #allocation8 [shape = 'u8[8192]{0}', space=vmem, size = 0x2000, scoped, tag = 'output window, operand 0, single buffered']
    %15 = vsyncpa [#allocation4], 0
    %16 = vsyncpa [#allocation7], 0
    %17 = vsyncpa [#allocation5], 0
    loop: start=0, step=1, limit=6
    $region2: #{tpu_custom_call.1} parent=1 // loop_pre_header
      _
    $region3: #{tpu_custom_call.1} parent=1 // loop_header
      %s19 = sphi 0, %s23
      %p20 = scmp.ge.s32.totalorder %s19, 6
      %s27 = sphi 0, %s27
      %s29 = sphi 0, %s27
      %s30 = sphi 0, %s29
      %s44 = sphi 0, %s30
      %s48 = sphi 0, %s48
      %s50 = sphi 0, %s48
      %s51 = sphi 0, %s50
      %s65 = sphi 0, %s51
      %s69 = sphi 0, %s69
      %s71 = sphi 0, %s69
      %s72 = sphi 0, %s71
      %s86 = sphi 0, %s72
      %s92 = sphi 0, %s94
      %s95 = sphi 0, %s92
      %s96 = sphi 0, %s95
      %s112 = sphi 0, %s96
      %s118 = sphi 0, %s120
      %s121 = sphi 0, %s118
      %s122 = sphi 0, %s121
      %s138 = sphi 0, %s122
      %s144 = sphi 0, %s146
      %s147 = sphi 0, %s144
      %s148 = sphi 0, %s147
      %s164 = sphi 0, %s148
      %s168 = sphi 0, %s168
      %s170 = sphi 0, %s168
      %s171 = sphi 0, %s170
      %s185 = sphi 0, %s171
      %s189 = sphi 0, %s189
      %s191 = sphi 0, %s189
      %s192 = sphi 0, %s191
      %s206 = sphi 0, %s192
      %s210 = sphi 0, %s210
      %s212 = sphi 0, %s210
      %s213 = sphi 0, %s212
      %s227 = sphi 0, %s213
      %s231 = sphi 0, %s231
      %s233 = sphi 0, %s231
      %s234 = sphi 0, %s233
      %s248 = sphi 0, %s234
      %s252 = sphi 0, %s252
      %s254 = sphi 0, %s252
      %s255 = sphi 0, %s254
      %s269 = sphi 0, %s255
    $region4: #{tpu_custom_call.1} parent=1 // loop_header_branch
      %22 = sbr.rel (%p20) target = $region8
    $region5: #{tpu_custom_call.1} parent=1 // loop_body
      %s24 = ssub.s32 %s19, 1
      %s25 = ssub.s32 %s19, 2
      %s26 = sadd.s32 %s19, 1
      %s28 = sadd.s32 %s27, 1
      %p31 = scmp.eq.s32.totalorder %s19, 3
      %p32 = scmp.ne.s32.totalorder %s27, %s29
      %p33 = scmp.eq.s32.totalorder %s19, 0
      %p34 = por %p32, %p33
      %p35 = scmp.ne.s32.totalorder %s27, %s29
      %p36 = scmp.eq.s32.totalorder %s24, 3
      %p37 = por %p35, %p36
      %p38 = scmp.ne.s32.totalorder %s29, %s30
      %p39 = scmp.eq.s32.totalorder %s24, 0
      %p40 = por %p38, %p39
      %p41 = scmp.ne.s32.totalorder %s29, %s30
      %p42 = scmp.eq.s32.totalorder %s25, 3
      %p43 = por %p41, %p42
      %p45 = scmp.ne.s32.totalorder %s30, %s44
      %p46 = scmp.eq.s32.totalorder %s25, 0
      %p47 = por %p45, %p46
      %s49 = sadd.s32 %s48, 1
      %p52 = scmp.eq.s32.totalorder %s19, 3
      %p53 = scmp.ne.s32.totalorder %s48, %s50
      %p54 = scmp.eq.s32.totalorder %s19, 0
      %p55 = por %p53, %p54
      %p56 = scmp.ne.s32.totalorder %s48, %s50
      %p57 = scmp.eq.s32.totalorder %s24, 3
      %p58 = por %p56, %p57
      %p59 = scmp.ne.s32.totalorder %s50, %s51
      %p60 = scmp.eq.s32.totalorder %s24, 0
      %p61 = por %p59, %p60
      %p62 = scmp.ne.s32.totalorder %s50, %s51
      %p63 = scmp.eq.s32.totalorder %s25, 3
      %p64 = por %p62, %p63
      %p66 = scmp.ne.s32.totalorder %s51, %s65
      %p67 = scmp.eq.s32.totalorder %s25, 0
      %p68 = por %p66, %p67
      %s70 = sadd.s32 %s69, 1
      %p73 = scmp.eq.s32.totalorder %s19, 3
      %p74 = scmp.ne.s32.totalorder %s69, %s71
      %p75 = scmp.eq.s32.totalorder %s19, 0
      %p76 = por %p74, %p75
      %p77 = scmp.ne.s32.totalorder %s69, %s71
      %p78 = scmp.eq.s32.totalorder %s24, 3
      %p79 = por %p77, %p78
      %p80 = scmp.ne.s32.totalorder %s71, %s72
      %p81 = scmp.eq.s32.totalorder %s24, 0
      %p82 = por %p80, %p81
      %p83 = scmp.ne.s32.totalorder %s71, %s72
      %p84 = scmp.eq.s32.totalorder %s25, 3
      %p85 = por %p83, %p84
      %p87 = scmp.ne.s32.totalorder %s72, %s86
      %p88 = scmp.eq.s32.totalorder %s25, 0
      %p89 = por %p87, %p88
      %s90 = ssub.s32 %s19, %s26
      %p91 = scmp.eq.s32.totalorder %s90, 0
      %s93 = sadd.s32 %s92, 1
      %s94 = scalar_select %p91, %s92, %s93
      %p97 = pneg %p91
      %p98 = scmp.eq.s32.totalorder %s19, 3
      %p99 = por %p97, %p98
      %p100 = scmp.ne.s32.totalorder %s92, %s95
      %p101 = scmp.eq.s32.totalorder %s19, 0
      %p102 = por %p100, %p101
      %p103 = scmp.ne.s32.totalorder %s92, %s95
      %p104 = scmp.eq.s32.totalorder %s24, 3
      %p105 = por %p103, %p104
      %p106 = scmp.ne.s32.totalorder %s95, %s96
      %p107 = scmp.eq.s32.totalorder %s24, 0
      %p108 = por %p106, %p107
      %p109 = scmp.ne.s32.totalorder %s95, %s96
      %p110 = scmp.eq.s32.totalorder %s25, 3
      %p111 = por %p109, %p110
      %p113 = scmp.ne.s32.totalorder %s96, %s112
      %p114 = scmp.eq.s32.totalorder %s25, 0
      %p115 = por %p113, %p114
      %s116 = ssub.s32 %s19, %s26
      %p117 = scmp.eq.s32.totalorder %s116, 0
      %s119 = sadd.s32 %s118, 1
      %s120 = scalar_select %p117, %s118, %s119
      %p123 = pneg %p117
      %p124 = scmp.eq.s32.totalorder %s19, 3
      %p125 = por %p123, %p124
      %p126 = scmp.ne.s32.totalorder %s118, %s121
      %p127 = scmp.eq.s32.totalorder %s19, 0
      %p128 = por %p126, %p127
      %p129 = scmp.ne.s32.totalorder %s118, %s121
      %p130 = scmp.eq.s32.totalorder %s24, 3
      %p131 = por %p129, %p130
      %p132 = scmp.ne.s32.totalorder %s121, %s122
      %p133 = scmp.eq.s32.totalorder %s24, 0
      %p134 = por %p132, %p133
      %p135 = scmp.ne.s32.totalorder %s121, %s122
      %p136 = scmp.eq.s32.totalorder %s25, 3
      %p137 = por %p135, %p136
      %p139 = scmp.ne.s32.totalorder %s122, %s138
      %p140 = scmp.eq.s32.totalorder %s25, 0
      %p141 = por %p139, %p140
      %s142 = ssub.s32 %s19, %s26
      %p143 = scmp.eq.s32.totalorder %s142, 0
      %s145 = sadd.s32 %s144, 1
      %s146 = scalar_select %p143, %s144, %s145
      %p149 = pneg %p143
      %p150 = scmp.eq.s32.totalorder %s19, 3
      %p151 = por %p149, %p150
      %p152 = scmp.ne.s32.totalorder %s144, %s147
      %p153 = scmp.eq.s32.totalorder %s19, 0
      %p154 = por %p152, %p153
      %p155 = scmp.ne.s32.totalorder %s144, %s147
      %p156 = scmp.eq.s32.totalorder %s24, 3
      %p157 = por %p155, %p156
      %p158 = scmp.ne.s32.totalorder %s147, %s148
      %p159 = scmp.eq.s32.totalorder %s24, 0
      %p160 = por %p158, %p159
      %p161 = scmp.ne.s32.totalorder %s147, %s148
      %p162 = scmp.eq.s32.totalorder %s25, 3
      %p163 = por %p161, %p162
      %p165 = scmp.ne.s32.totalorder %s148, %s164
      %p166 = scmp.eq.s32.totalorder %s25, 0
      %p167 = por %p165, %p166
      %s169 = sadd.s32 %s168, 1
      %p172 = scmp.eq.s32.totalorder %s19, 3
      %p173 = scmp.ne.s32.totalorder %s168, %s170
      %p174 = scmp.eq.s32.totalorder %s19, 0
      %p175 = por %p173, %p174
      %p176 = scmp.ne.s32.totalorder %s168, %s170
      %p177 = scmp.eq.s32.totalorder %s24, 3
      %p178 = por %p176, %p177
      %p179 = scmp.ne.s32.totalorder %s170, %s171
      %p180 = scmp.eq.s32.totalorder %s24, 0
      %p181 = por %p179, %p180
      %p182 = scmp.ne.s32.totalorder %s170, %s171
      %p183 = scmp.eq.s32.totalorder %s25, 3
      %p184 = por %p182, %p183
      %p186 = scmp.ne.s32.totalorder %s171, %s185
      %p187 = scmp.eq.s32.totalorder %s25, 0
      %p188 = por %p186, %p187
      %s190 = sadd.s32 %s189, 1
      %p193 = scmp.eq.s32.totalorder %s19, 3
      %p194 = scmp.ne.s32.totalorder %s189, %s191
      %p195 = scmp.eq.s32.totalorder %s19, 0
      %p196 = por %p194, %p195
      %p197 = scmp.ne.s32.totalorder %s189, %s191
      %p198 = scmp.eq.s32.totalorder %s24, 3
      %p199 = por %p197, %p198
      %p200 = scmp.ne.s32.totalorder %s191, %s192
      %p201 = scmp.eq.s32.totalorder %s24, 0
      %p202 = por %p200, %p201
      %p203 = scmp.ne.s32.totalorder %s191, %s192
      %p204 = scmp.eq.s32.totalorder %s25, 3
      %p205 = por %p203, %p204
      %p207 = scmp.ne.s32.totalorder %s192, %s206
      %p208 = scmp.eq.s32.totalorder %s25, 0
      %p209 = por %p207, %p208
      %s211 = sadd.s32 %s210, 1
      %p214 = scmp.eq.s32.totalorder %s19, 3
      %p215 = scmp.ne.s32.totalorder %s210, %s212
      %p216 = scmp.eq.s32.totalorder %s19, 0
      %p217 = por %p215, %p216
      %p218 = scmp.ne.s32.totalorder %s210, %s212
      %p219 = scmp.eq.s32.totalorder %s24, 3
      %p220 = por %p218, %p219
      %p221 = scmp.ne.s32.totalorder %s212, %s213
      %p222 = scmp.eq.s32.totalorder %s24, 0
      %p223 = por %p221, %p222
      %p224 = scmp.ne.s32.totalorder %s212, %s213
      %p225 = scmp.eq.s32.totalorder %s25, 3
      %p226 = por %p224, %p225
      %p228 = scmp.ne.s32.totalorder %s213, %s227
      %p229 = scmp.eq.s32.totalorder %s25, 0
      %p230 = por %p228, %p229
      %s232 = sadd.s32 %s231, 1
      %p235 = scmp.eq.s32.totalorder %s19, 3
      %p236 = scmp.ne.s32.totalorder %s231, %s233
      %p237 = scmp.eq.s32.totalorder %s19, 0
      %p238 = por %p236, %p237
      %p239 = scmp.ne.s32.totalorder %s231, %s233
      %p240 = scmp.eq.s32.totalorder %s24, 3
      %p241 = por %p239, %p240
      %p242 = scmp.ne.s32.totalorder %s233, %s234
      %p243 = scmp.eq.s32.totalorder %s24, 0
      %p244 = por %p242, %p243
      %p245 = scmp.ne.s32.totalorder %s233, %s234
      %p246 = scmp.eq.s32.totalorder %s25, 3
      %p247 = por %p245, %p246
      %p249 = scmp.ne.s32.totalorder %s234, %s248
      %p250 = scmp.eq.s32.totalorder %s25, 0
      %p251 = por %p249, %p250
      %s253 = sadd.s32 %s252, 1
      %p256 = scmp.eq.s32.totalorder %s19, 3
      %p257 = scmp.ne.s32.totalorder %s252, %s254
      %p258 = scmp.eq.s32.totalorder %s19, 0
      %p259 = por %p257, %p258
      %p260 = scmp.ne.s32.totalorder %s252, %s254
      %p261 = scmp.eq.s32.totalorder %s24, 3
      %p262 = por %p260, %p261
      %p263 = scmp.ne.s32.totalorder %s254, %s255
      %p264 = scmp.eq.s32.totalorder %s24, 0
      %p265 = por %p263, %p264
      %p266 = scmp.ne.s32.totalorder %s254, %s255
      %p267 = scmp.eq.s32.totalorder %s25, 3
      %p268 = por %p266, %p267
      %p270 = scmp.ne.s32.totalorder %s255, %s269
      %p271 = scmp.eq.s32.totalorder %s25, 0
      %p272 = por %p270, %p271
      %p273 = scmp.le.s32.totalorder 1, %s19
      %p274 = scmp.lt.s32.totalorder %s19, 5
      %p275 = pnand %p273, %p274
      %p276 = pneg %p275
      // Predicated region
      $region9: #{tpu_custom_call.1} parent=5 // pred_check
        _
      $region10: #{tpu_custom_call.1} parent=5 // pred_check_branch
        %278 = sbr.rel (%p275) target = $region12
      $region11: #{tpu_custom_call.1} parent=5 // pred_region
        %s279 = ssub.s32 %s19, 1
        // Predicated region
        $region13: #{tpu_custom_call.1} parent=11 // pred_check
          %p280 = pneg %p40
        $region14: #{tpu_custom_call.1} parent=11 // pred_check_branch
          %282 = sbr.rel (%p280) target = $region16
        $region15: #{tpu_custom_call.1} parent=11 // pred_region
          %s284 = ssub.s32 128, 128
          %285 = vsyncadd [#allocation4], %s284
          %s286 = sshll.u32 [#allocation3], 4
          %s287 = int_to_ptr.vmem [resolvable:$true] %s286
          %292 = dma.hbm_to_vmem [thread:$0]  %s0, 128, %s287, [#allocation4], 64, 64, 4
        $region16: #{tpu_custom_call.1} parent=11 // pred_fallthru
          _
        // Predicated region
        $region17: #{tpu_custom_call.1} parent=11 // pred_check
          %p293 = pneg %p61
        $region18: #{tpu_custom_call.1} parent=11 // pred_check_branch
          %295 = sbr.rel (%p293) target = $region20
        $region19: #{tpu_custom_call.1} parent=11 // pred_region
          %s297 = ssub.s32 256, 256
          %298 = vsyncadd [#allocation7], %s297
          %s299 = sshll.u32 [#allocation6], 4
          %s300 = int_to_ptr.vmem [resolvable:$true] %s299
          %305 = dma.hbm_to_vmem [thread:$0]  %s1, 256, %s300, [#allocation7], 64, 64, 4
        $region20: #{tpu_custom_call.1} parent=11 // pred_fallthru
          _
        // Predicated region
        $region21: #{tpu_custom_call.1} parent=11 // pred_check
          %p306 = pneg %p82
        $region22: #{tpu_custom_call.1} parent=11 // pred_check_branch
          %308 = sbr.rel (%p306) target = $region24
        $region23: #{tpu_custom_call.1} parent=11 // pred_region
          _
        $region24: #{tpu_custom_call.1} parent=11 // pred_fallthru
          _
        // Predicated region
        $region25: #{tpu_custom_call.1} parent=11 // pred_check
          %p309 = pneg %p181
        $region26: #{tpu_custom_call.1} parent=11 // pred_check_branch
          %311 = sbr.rel (%p309) target = $region28
        $region27: #{tpu_custom_call.1} parent=11 // pred_region
          _
        $region28: #{tpu_custom_call.1} parent=11 // pred_fallthru
          _
        // Predicated region
        $region29: #{tpu_custom_call.1} parent=11 // pred_check
          %p312 = pneg %p202
        $region30: #{tpu_custom_call.1} parent=11 // pred_check_branch
          %314 = sbr.rel (%p312) target = $region32
        $region31: #{tpu_custom_call.1} parent=11 // pred_region
          _
        $region32: #{tpu_custom_call.1} parent=11 // pred_fallthru
          _
        // Predicated region
        $region33: #{tpu_custom_call.1} parent=11 // pred_check
          %p315 = pneg %p223
        $region34: #{tpu_custom_call.1} parent=11 // pred_check_branch
          %317 = sbr.rel (%p315) target = $region36
        $region35: #{tpu_custom_call.1} parent=11 // pred_region
          _
        $region36: #{tpu_custom_call.1} parent=11 // pred_fallthru
          _
        // Predicated region
        $region37: #{tpu_custom_call.1} parent=11 // pred_check
          %p318 = pneg %p244
        $region38: #{tpu_custom_call.1} parent=11 // pred_check_branch
          %320 = sbr.rel (%p318) target = $region40
        $region39: #{tpu_custom_call.1} parent=11 // pred_region
          _
        $region40: #{tpu_custom_call.1} parent=11 // pred_fallthru
          _
      $region12: #{tpu_custom_call.1} parent=5 // pred_fallthru
        _
      %p321 = scmp.lt.s32.totalorder %s19, 4
      // Predicated region
      $region41: #{tpu_custom_call.1} parent=5 // pred_check
        %p322 = pneg %p321
      $region42: #{tpu_custom_call.1} parent=5 // pred_check_branch
        %324 = sbr.rel (%p322) target = $region44
      $region43: #{tpu_custom_call.1} parent=5 // pred_region
        // Predicated region
        $region45: #{tpu_custom_call.1} parent=43 // pred_check
          %p325 = pneg %p102
        $region46: #{tpu_custom_call.1} parent=43 // pred_check_branch
          %327 = sbr.rel (%p325) target = $region48
        $region47: #{tpu_custom_call.1} parent=43 // pred_region
          %p328 = scmp.lt.s32.totalorder %s19, 3
          %s329 = scalar_select %p328, %s19, 3
          %s330 = smul.addr %s329, 4
          %s331 = smul.addr %s330, 4
          %s332 = scalar_lea.vmem %s3, %s331
        $region48: #{tpu_custom_call.1} parent=43 // pred_fallthru
          _
        // Predicated region
        $region49: #{tpu_custom_call.1} parent=43 // pred_check
          %p333 = pneg %p128
        $region50: #{tpu_custom_call.1} parent=43 // pred_check_branch
          %335 = sbr.rel (%p333) target = $region52
        $region51: #{tpu_custom_call.1} parent=43 // pred_region
          %p336 = scmp.lt.s32.totalorder %s19, 3
          %s337 = scalar_select %p336, %s19, 3
          %s338 = smul.addr %s337, 4
          %s339 = smul.addr %s338, 4
          %s340 = scalar_lea.vmem %s4, %s339
        $region52: #{tpu_custom_call.1} parent=43 // pred_fallthru
          _
        // Predicated region
        $region53: #{tpu_custom_call.1} parent=43 // pred_check
          %p341 = pneg %p154
        $region54: #{tpu_custom_call.1} parent=43 // pred_check_branch
          %343 = sbr.rel (%p341) target = $region56
        $region55: #{tpu_custom_call.1} parent=43 // pred_region
          %p344 = scmp.lt.s32.totalorder %s19, 3
          %s345 = scalar_select %p344, %s19, 3
          %s346 = smul.addr %s345, 2
          %s347 = smul.addr %s346, 4
          %s348 = scalar_lea.vmem %s5, %s347
        $region56: #{tpu_custom_call.1} parent=43 // pred_fallthru
          _
      $region44: #{tpu_custom_call.1} parent=5 // pred_fallthru
        _
      %p349 = scmp.le.s32.totalorder 1, %s19
      %p350 = scmp.lt.s32.totalorder %s19, 5
      %p351 = pnand %p349, %p350
      %p352 = pneg %p351
      // Predicated region
      $region57: #{tpu_custom_call.1} parent=5 // pred_check
        _
      $region58: #{tpu_custom_call.1} parent=5 // pred_check_branch
        %354 = sbr.rel (%p351) target = $region60
      $region59: #{tpu_custom_call.1} parent=5 // pred_region
        %s355 = ssub.s32 %s19, 1
        // Predicated region
        $region61: #{tpu_custom_call.1} parent=59 // pred_check
          %p356 = pneg %p40
        $region62: #{tpu_custom_call.1} parent=59 // pred_check_branch
          %358 = sbr.rel (%p356) target = $region64
        $region63: #{tpu_custom_call.1} parent=59 // pred_region
          %359 = dma.done [#allocation4], 128
        $region64: #{tpu_custom_call.1} parent=59 // pred_fallthru
          _
        // Predicated region
        $region65: #{tpu_custom_call.1} parent=59 // pred_check
          %p360 = pneg %p61
        $region66: #{tpu_custom_call.1} parent=59 // pred_check_branch
          %362 = sbr.rel (%p360) target = $region68
        $region67: #{tpu_custom_call.1} parent=59 // pred_region
          %363 = dma.done [#allocation7], 256
        $region68: #{tpu_custom_call.1} parent=59 // pred_fallthru
          _
        %p364 = pneg %p40
        %p365 = pneg %p37
        %p366 = pneg %p61
        %p367 = pneg %p58
        %p368 = pneg %p82
        %p369 = pneg %p79
        %p370 = scmp.lt.s32.totalorder %s24, 3
        %s371 = scalar_select %p370, %s24, 3
        %s372 = smul.addr %s371, 4
        %s373 = smul.addr %s372, 4
        %s374 = scalar_lea.vmem %s3, %s373
        %p375 = pneg %p108
        %p376 = pneg %p105
        %p377 = scmp.lt.s32.totalorder %s24, 3
        %s378 = scalar_select %p377, %s24, 3
        %s379 = smul.addr %s378, 4
        %s380 = smul.addr %s379, 4
        %s381 = scalar_lea.vmem %s4, %s380
        %p382 = pneg %p134
        %p383 = pneg %p131
        %p384 = scmp.lt.s32.totalorder %s24, 3
        %s385 = scalar_select %p384, %s24, 3
        %s386 = smul.addr %s385, 2
        %s387 = smul.addr %s386, 4
        %s388 = scalar_lea.vmem %s5, %s387
        %p389 = pneg %p160
        %p390 = pneg %p157
        %p391 = pneg %p181
        %p392 = pneg %p178
        %p393 = pneg %p202
        %p394 = pneg %p199
        %p395 = pneg %p223
        %p396 = pneg %p220
        %p397 = pneg %p244
        %p398 = pneg %p241
        %p399 = pneg %p265
        %p400 = pneg %p262
        %p401 = scmp.lt.s32.totalorder %s24, 3
        %s402 = scalar_select %p401, %s24, 3
        %s403 = smul.addr %s402, 4
        %s404 = smul.addr %s403, 4
        %s405 = scalar_lea.vmem %s3, %s404
        %p406 = scmp.lt.s32.totalorder %s24, 3
        %s407 = scalar_select %p406, %s24, 3
        %s408 = smul.addr %s407, 4
        %s409 = smul.addr %s408, 4
        %s410 = scalar_lea.vmem %s4, %s409
        %p411 = scmp.lt.s32.totalorder %s24, 3
        %s412 = scalar_select %p411, %s24, 3
        %s413 = smul.addr %s412, 2
        %s414 = smul.addr %s413, 4
        %s415 = scalar_lea.vmem %s5, %s414
        %p417 = scmp.eq.s32.totalorder %s24, 0
        // Predicated region
        $region69: #{tpu_custom_call.1} parent=59 // pred_check
          %p418 = pneg %p417
        $region70: #{tpu_custom_call.1} parent=59 // pred_check_branch
          %420 = sbr.rel (%p418) target = $region72
        $region71: #{tpu_custom_call.1} parent=59 // pred_region
          %v421 = vld [vmem:[#allocation3] sm:$0xf]
          %v422 = vld [vmem:[#allocation3 + $0x4] sm:$0xf]
          %v423 = vld [vmem:[#allocation6] sm:$0xf]
          %v424 = vld [vmem:[#allocation6 + $0x4] sm:$0xf]
          %v425 = vld [vmem:[#allocation6 + $0x8] sm:$0xf]
          %v426 = vld [vmem:[#allocation6 + $0xc] sm:$0xf]
          %v427 = vld [vmem:[%s2] sm:$0x1]
          %v429 = vlaneseq
          %v430 = vshrl.u32 %v429, 7
          %v431 = vsub.s32 0, %v430
          %v432 = vrot.slane %v427, %v431
          %v436 = vunpack.c.l.b16 %v421
          %v437 = vunpack.c.l.b16 %v422
          %v438 = vpack.c.b16 %v437, %v436
          %v443 = vunpack.c.l.b16 %v423
          %v444 = vunpack.c.l.b16 %v424
          %v445 = vunpack.c.l.b16 %v425
          %v446 = vunpack.c.l.b16 %v426
          %v447 = vpack.c.b16 %v444, %v443
          %v448 = vpack.c.b16 %v446, %v445
          %vm451 = vcmask 261120
          %v453 = vsel %vm451, %v438, 0
          %455 = vmatprep.subr.bf16.mxu0 0
          %456 = vmatpush1.bf16.msra.mxu0 %v447
          %457 = vmatprep.subr.bf16.mxu0 0
          %458 = vmatpush1.bf16.msra.mxu0 %v448
          %459 = vmatprep.subr.bf16.mxu0 0
          %460 = vmatpush1.bf16.msra.mxu0 0
          %461 = vmatprep.subr.bf16.mxu0 0
          %462 = vmatpush1.bf16.msra.mxu0 0
          %463 = vmatprep.subr.bf16.mxu0 0
          %464 = vmatpush1.bf16.msra.mxu0 0
          %465 = vmatprep.subr.bf16.mxu0 0
          %466 = vmatpush1.bf16.msra.mxu0 0
          %467 = vmatprep.subr.bf16.mxu0 0
          %468 = vmatpush1.bf16.msra.mxu0 0
          %469 = vmatprep.subr.bf16.mxu0 0
          %470 = vmatpush1.bf16.msra.mxu0 0
          %471 = vmatprep.subr.bf16.mxu0 0
          %472 = vmatpush1.bf16.msra.mxu0 0
          %473 = vmatprep.subr.bf16.mxu0 0
          %474 = vmatpush1.bf16.msra.mxu0 0
          %475 = vmatprep.subr.bf16.mxu0 0
          %476 = vmatpush1.bf16.msra.mxu0 0
          %477 = vmatprep.subr.bf16.mxu0 0
          %478 = vmatpush1.bf16.msra.mxu0 0
          %479 = vmatprep.subr.bf16.mxu0 0
          %480 = vmatpush1.bf16.msra.mxu0 0
          %481 = vmatprep.subr.bf16.mxu0 0
          %482 = vmatpush1.bf16.msra.mxu0 0
          %483 = vmatprep.subr.bf16.mxu0 0
          %484 = vmatpush1.bf16.msra.mxu0 0
          %485 = vmatprep.subr.bf16.mxu0 0
          %486 = vmatpush1.bf16.msra.mxu0 0
          %487 = vmatprep.mubr.bf16.mxu0 0
          %488 = vmatmul.mubr.bf16.gmra.mrb[0].mxu0 %v453
          %v489 = vpop.f32.mrb[0].mxu0
          %v490 = vadd.f32 %v432, %v489
          %v491 = vpop.f32.mrb[0].mxu0
          %v492 = vpop.f32.mrb[0].mxu0
          %v493 = vadd.f32 %v432, %v492
          %v494 = vpop.f32.mrb[0].mxu0
          %495 = vdwg.mxu0
          %496 = vst.msk [vmem:[#allocation2] sm:$0xff] %vm451, %v490
          %497 = vst.msk [vmem:[#allocation2 + $0x8] sm:$0xff] %vm451, %v493
        $region72: #{tpu_custom_call.1} parent=59 // pred_fallthru
          _
        %v498 = vld [vmem:[#allocation2] sm:$0xff]
        %v499 = vld [vmem:[#allocation2 + $0x8] sm:$0xff]
        %v500 = vpack.c.bf16 %v499, %v498
        %v501 = vld [vmem:[%s405] sm:$0xf]
        %v502 = vld [vmem:[%s405 + $0x4] sm:$0xf]
        %v503 = vld [vmem:[%s405 + $0x8] sm:$0xf]
        %v504 = vld [vmem:[%s405 + $0xc] sm:$0xf]
        %v509 = vunpack.c.l.b16 %v501
        %v510 = vunpack.c.l.b16 %v502
        %v511 = vunpack.c.l.b16 %v503
        %v512 = vunpack.c.l.b16 %v504
        %v513 = vpack.c.b16 %v510, %v509
        %v514 = vpack.c.b16 %v512, %v511
        %vm517 = vcmask 261120
        %v519 = vsel %vm517, %v500, 0
        %521 = vmatprep.subr.bf16.mxu0 0
        %522 = vmatpush1.bf16.msra.mxu0 %v513
        %523 = vmatprep.subr.bf16.mxu0 0
        %524 = vmatpush1.bf16.msra.mxu0 %v514
        %525 = vmatprep.subr.bf16.mxu0 0
        %526 = vmatpush1.bf16.msra.mxu0 0
        %527 = vmatprep.subr.bf16.mxu0 0
        %528 = vmatpush1.bf16.msra.mxu0 0
        %529 = vmatprep.subr.bf16.mxu0 0
        %530 = vmatpush1.bf16.msra.mxu0 0
        %531 = vmatprep.subr.bf16.mxu0 0
        %532 = vmatpush1.bf16.msra.mxu0 0
        %533 = vmatprep.subr.bf16.mxu0 0
        %534 = vmatpush1.bf16.msra.mxu0 0
        %535 = vmatprep.subr.bf16.mxu0 0
        %536 = vmatpush1.bf16.msra.mxu0 0
        %537 = vmatprep.subr.bf16.mxu0 0
        %538 = vmatpush1.bf16.msra.mxu0 0
        %539 = vmatprep.subr.bf16.mxu0 0
        %540 = vmatpush1.bf16.msra.mxu0 0
        %541 = vmatprep.subr.bf16.mxu0 0
        %542 = vmatpush1.bf16.msra.mxu0 0
        %543 = vmatprep.subr.bf16.mxu0 0
        %544 = vmatpush1.bf16.msra.mxu0 0
        %545 = vmatprep.subr.bf16.mxu0 0
        %546 = vmatpush1.bf16.msra.mxu0 0
        %547 = vmatprep.subr.bf16.mxu0 0
        %548 = vmatpush1.bf16.msra.mxu0 0
        %549 = vmatprep.subr.bf16.mxu0 0
        %550 = vmatpush1.bf16.msra.mxu0 0
        %551 = vmatprep.subr.bf16.mxu0 0
        %552 = vmatpush1.bf16.msra.mxu0 0
        %553 = vmatprep.mubr.bf16.mxu0 0
        %554 = vmatmul.mubr.bf16.gmra.mrb[0].mxu0 %v519
        %v555 = vpop.f32.mrb[0].mxu0
        %v556 = vadd.f32 0.0, %v555
        %v557 = vpop.f32.mrb[0].mxu0
        %v558 = vpop.f32.mrb[0].mxu0
        %v559 = vadd.f32 0.0, %v558
        %v560 = vpop.f32.mrb[0].mxu0
        %561 = vdwg.mxu0
        %v562 = vld [vmem:[%s410] sm:$0xf]
        %v563 = vld [vmem:[%s410 + $0x4] sm:$0xf]
        %v564 = vld [vmem:[%s410 + $0x8] sm:$0xf]
        %v565 = vld [vmem:[%s410 + $0xc] sm:$0xf]
        %v570 = vunpack.c.l.b16 %v562
        %v571 = vunpack.c.l.b16 %v563
        %v572 = vunpack.c.l.b16 %v564
        %v573 = vunpack.c.l.b16 %v565
        %v574 = vpack.c.b16 %v571, %v570
        %v575 = vpack.c.b16 %v573, %v572
        %578 = vmatprep.subr.bf16.mxu0 0
        %579 = vmatpush1.bf16.msra.mxu0 %v574
        %580 = vmatprep.subr.bf16.mxu0 0
        %581 = vmatpush1.bf16.msra.mxu0 %v575
        %582 = vmatprep.subr.bf16.mxu0 0
        %583 = vmatpush1.bf16.msra.mxu0 0
        %584 = vmatprep.subr.bf16.mxu0 0
        %585 = vmatpush1.bf16.msra.mxu0 0
        %586 = vmatprep.subr.bf16.mxu0 0
        %587 = vmatpush1.bf16.msra.mxu0 0
        %588 = vmatprep.subr.bf16.mxu0 0
        %589 = vmatpush1.bf16.msra.mxu0 0
        %590 = vmatprep.subr.bf16.mxu0 0
        %591 = vmatpush1.bf16.msra.mxu0 0
        %592 = vmatprep.subr.bf16.mxu0 0
        %593 = vmatpush1.bf16.msra.mxu0 0
        %594 = vmatprep.subr.bf16.mxu0 0
        %595 = vmatpush1.bf16.msra.mxu0 0
        %596 = vmatprep.subr.bf16.mxu0 0
        %597 = vmatpush1.bf16.msra.mxu0 0
        %598 = vmatprep.subr.bf16.mxu0 0
        %599 = vmatpush1.bf16.msra.mxu0 0
        %600 = vmatprep.subr.bf16.mxu0 0
        %601 = vmatpush1.bf16.msra.mxu0 0
        %602 = vmatprep.subr.bf16.mxu0 0
        %603 = vmatpush1.bf16.msra.mxu0 0
        %604 = vmatprep.subr.bf16.mxu0 0
        %605 = vmatpush1.bf16.msra.mxu0 0
        %606 = vmatprep.subr.bf16.mxu0 0
        %607 = vmatpush1.bf16.msra.mxu0 0
        %608 = vmatprep.subr.bf16.mxu0 0
        %609 = vmatpush1.bf16.msra.mxu0 0
        %610 = vmatprep.mubr.bf16.mxu0 0
        %611 = vmatmul.mubr.bf16.gmra.mrb[0].mxu0 %v519
        %v612 = vpop.f32.mrb[0].mxu0
        %v613 = vadd.f32 0.0, %v612
        %v614 = vpop.f32.mrb[0].mxu0
        %v615 = vpop.f32.mrb[0].mxu0
        %v616 = vadd.f32 0.0, %v615
        %v617 = vpop.f32.mrb[0].mxu0
        %618 = vdwg.mxu0
        %v619 = vpack.c.bf16 %v559, %v556
        %v620 = vpack.c.bf16 %v616, %v613
        %v621 = vld [vmem:[%s415] sm:$0xf]
        %v622 = vld [vmem:[%s415 + $0x4] sm:$0xf]
        %v625 = vunpack.c.l.b16 %v621
        %v626 = vunpack.c.l.b16 %v622
        %v627 = vpack.c.b16 %v626, %v625
        %v629 = vld [vmem:[%s6] sm:$0xf]
        %v630 = vld [vmem:[%s6 + $0x4] sm:$0xf]
        %v631 = vld [vmem:[%s6 + $0x8] sm:$0xf]
        %v632 = vld [vmem:[%s6 + $0xc] sm:$0xf]
        %v633 = vld [vmem:[%s6 + $0x10] sm:$0xf]
        %v634 = vld [vmem:[%s6 + $0x14] sm:$0xf]
        %v635 = vld [vmem:[%s6 + $0x18] sm:$0xf]
        %v636 = vld [vmem:[%s6 + $0x1c] sm:$0xf]
        %v637 = vld [vmem:[%s6 + $0x20] sm:$0xf]
        %v638 = vld [vmem:[%s6 + $0x24] sm:$0xf]
        %v639 = vld [vmem:[%s6 + $0x28] sm:$0xf]
        %v640 = vld [vmem:[%s6 + $0x2c] sm:$0xf]
        %v641 = vld [vmem:[%s6 + $0x30] sm:$0xf]
        %v642 = vld [vmem:[%s6 + $0x34] sm:$0xf]
        %v643 = vld [vmem:[%s6 + $0x38] sm:$0xf]
        %v644 = vld [vmem:[%s6 + $0x3c] sm:$0xf]
        %v661 = vunpack.c.l.b16 %v629
        %v662 = vunpack.c.l.b16 %v630
        %v663 = vunpack.c.l.b16 %v631
        %v664 = vunpack.c.l.b16 %v632
        %v665 = vunpack.c.l.b16 %v633
        %v666 = vunpack.c.l.b16 %v634
        %v667 = vunpack.c.l.b16 %v635
        %v668 = vunpack.c.l.b16 %v636
        %v669 = vunpack.c.l.b16 %v637
        %v670 = vunpack.c.l.b16 %v638
        %v671 = vunpack.c.l.b16 %v639
        %v672 = vunpack.c.l.b16 %v640
        %v673 = vunpack.c.l.b16 %v641
        %v674 = vunpack.c.l.b16 %v642
        %v675 = vunpack.c.l.b16 %v643
        %v676 = vunpack.c.l.b16 %v644
        %v677 = vpack.c.b16 %v662, %v661
        %v678 = vpack.c.b16 %v664, %v663
        %v679 = vpack.c.b16 %v666, %v665
        %v680 = vpack.c.b16 %v668, %v667
        %v681 = vpack.c.b16 %v670, %v669
        %v682 = vpack.c.b16 %v672, %v671
        %v683 = vpack.c.b16 %v674, %v673
        %v684 = vpack.c.b16 %v676, %v675
        %vm685 = vcmask 392192
        %v687 = vsel %vm685, %v677, 0
        %v690 = vsel %vm685, %v678, 0
        %v693 = vsel %vm685, %v679, 0
        %v696 = vsel %vm685, %v680, 0
        %v699 = vsel %vm685, %v681, 0
        %v702 = vsel %vm685, %v682, 0
        %v705 = vsel %vm685, %v683, 0
        %v708 = vsel %vm685, %v684, 0
        %710 = vmatprep.subr.bf16.mxu0 0
        %711 = vmatpush1.bf16.msra.mxu0 %v619
        %712 = vmatprep.subr.bf16.mxu0 0
        %713 = vmatpush1.bf16.msra.mxu0 %v620
        %714 = vmatprep.subr.bf16.mxu0 0
        %715 = vmatpush1.bf16.msra.mxu0 %v627
        %716 = vmatprep.subr.bf16.mxu0 0
        %717 = vmatpush1.bf16.msra.mxu0 0
        %718 = vmatprep.subr.bf16.mxu0 0
        %719 = vmatpush1.bf16.msra.mxu0 0
        %720 = vmatprep.subr.bf16.mxu0 0
        %721 = vmatpush1.bf16.msra.mxu0 0
        %722 = vmatprep.subr.bf16.mxu0 0
        %723 = vmatpush1.bf16.msra.mxu0 0
        %724 = vmatprep.subr.bf16.mxu0 0
        %725 = vmatpush1.bf16.msra.mxu0 0
        %726 = vmatprep.subr.bf16.mxu0 0
        %727 = vmatpush1.bf16.msra.mxu0 0
        %728 = vmatprep.subr.bf16.mxu0 0
        %729 = vmatpush1.bf16.msra.mxu0 0
        %730 = vmatprep.subr.bf16.mxu0 0
        %731 = vmatpush1.bf16.msra.mxu0 0
        %732 = vmatprep.subr.bf16.mxu0 0
        %733 = vmatpush1.bf16.msra.mxu0 0
        %734 = vmatprep.subr.bf16.mxu0 0
        %735 = vmatpush1.bf16.msra.mxu0 0
        %736 = vmatprep.subr.bf16.mxu0 0
        %737 = vmatpush1.bf16.msra.mxu0 0
        %738 = vmatprep.subr.bf16.mxu0 0
        %739 = vmatpush1.bf16.msra.mxu0 0
        %740 = vmatprep.subr.bf16.mxu0 0
        %741 = vmatpush1.bf16.msra.mxu0 0
        %742 = vmatprep.mubr.bf16.mxu0 0
        %743 = vmatmul.mubr.bf16.gmra.mrb[0].mxu0 %v687
        %v744 = vpop.f32.mrb[0].mxu0
        %v745 = vadd.f32 0.0, %v744
        %v746 = vpop.f32.mrb[0].mxu0
        %v747 = vpop.f32.mrb[0].mxu0
        %v748 = vadd.f32 0.0, %v747
        %v749 = vpop.f32.mrb[0].mxu0
        %750 = vmatprep.mubr.bf16.mxu0 0
        %751 = vmatmul.mubr.bf16.gmra.mrb[0].mxu0 %v690
        %v752 = vpop.f32.mrb[0].mxu0
        %v753 = vadd.f32 0.0, %v752
        %v754 = vpop.f32.mrb[0].mxu0
        %v755 = vpop.f32.mrb[0].mxu0
        %v756 = vadd.f32 0.0, %v755
        %v757 = vpop.f32.mrb[0].mxu0
        %758 = vmatprep.mubr.bf16.mxu0 0
        %759 = vmatmul.mubr.bf16.gmra.mrb[0].mxu0 %v693
        %v760 = vpop.f32.mrb[0].mxu0
        %v761 = vadd.f32 0.0, %v760
        %v762 = vpop.f32.mrb[0].mxu0
        %v763 = vpop.f32.mrb[0].mxu0
        %v764 = vadd.f32 0.0, %v763
        %v765 = vpop.f32.mrb[0].mxu0
        %766 = vmatprep.mubr.bf16.mxu0 0
        %767 = vmatmul.mubr.bf16.gmra.mrb[0].mxu0 %v696
        %v768 = vpop.f32.mrb[0].mxu0
        %v769 = vadd.f32 0.0, %v768
        %v770 = vpop.f32.mrb[0].mxu0
        %v771 = vpop.f32.mrb[0].mxu0
        %v772 = vadd.f32 0.0, %v771
        %v773 = vpop.f32.mrb[0].mxu0
        %774 = vmatprep.mubr.bf16.mxu0 0
        %775 = vmatmul.mubr.bf16.gmra.mrb[0].mxu0 %v699
        %v776 = vpop.f32.mrb[0].mxu0
        %v777 = vadd.f32 0.0, %v776
        %v778 = vpop.f32.mrb[0].mxu0
        %v779 = vpop.f32.mrb[0].mxu0
        %v780 = vadd.f32 0.0, %v779
        %v781 = vpop.f32.mrb[0].mxu0
        %782 = vmatprep.mubr.bf16.mxu0 0
        %783 = vmatmul.mubr.bf16.gmra.mrb[0].mxu0 %v702
        %v784 = vpop.f32.mrb[0].mxu0
        %v785 = vadd.f32 0.0, %v784
        %v786 = vpop.f32.mrb[0].mxu0
        %v787 = vpop.f32.mrb[0].mxu0
        %v788 = vadd.f32 0.0, %v787
        %v789 = vpop.f32.mrb[0].mxu0
        %790 = vmatprep.mubr.bf16.mxu0 0
        %791 = vmatmul.mubr.bf16.gmra.mrb[0].mxu0 %v705
        %v792 = vpop.f32.mrb[0].mxu0
        %v793 = vadd.f32 0.0, %v792
        %v794 = vpop.f32.mrb[0].mxu0
        %v795 = vpop.f32.mrb[0].mxu0
        %v796 = vadd.f32 0.0, %v795
        %v797 = vpop.f32.mrb[0].mxu0
        %798 = vmatprep.mubr.bf16.mxu0 0
        %799 = vmatmul.mubr.bf16.gmra.mrb[0].mxu0 %v708
        %v800 = vpop.f32.mrb[0].mxu0
        %v801 = vadd.f32 0.0, %v800
        %v802 = vpop.f32.mrb[0].mxu0
        %v803 = vpop.f32.mrb[0].mxu0
        %v804 = vadd.f32 0.0, %v803
        %v805 = vpop.f32.mrb[0].mxu0
        %806 = vdwg.mxu0
        %vm807 = vcmp.ge.f32.partialorder %v745, 0.0
        %vm808 = vcmp.ge.f32.partialorder %v748, 0.0
        %vm809 = vcmp.ge.f32.partialorder %v753, 0.0
        %vm810 = vcmp.ge.f32.partialorder %v756, 0.0
        %vm811 = vcmp.ge.f32.partialorder %v761, 0.0
        %vm812 = vcmp.ge.f32.partialorder %v764, 0.0
        %vm813 = vcmp.ge.f32.partialorder %v769, 0.0
        %vm814 = vcmp.ge.f32.partialorder %v772, 0.0
        %vm815 = vcmp.ge.f32.partialorder %v777, 0.0
        %vm816 = vcmp.ge.f32.partialorder %v780, 0.0
        %vm817 = vcmp.ge.f32.partialorder %v785, 0.0
        %vm818 = vcmp.ge.f32.partialorder %v788, 0.0
        %vm819 = vcmp.ge.f32.partialorder %v793, 0.0
        %vm820 = vcmp.ge.f32.partialorder %v796, 0.0
        %vm821 = vcmp.ge.f32.partialorder %v801, 0.0
        %vm822 = vcmp.ge.f32.partialorder %v804, 0.0
        %v823 = vmul.f32 %v745, 0.2
        %v824 = vmul.f32 %v748, 0.2
        %v825 = vmul.f32 %v753, 0.2
        %v826 = vmul.f32 %v756, 0.2
        %v827 = vmul.f32 %v761, 0.2
        %v828 = vmul.f32 %v764, 0.2
        %v829 = vmul.f32 %v769, 0.2
        %v830 = vmul.f32 %v772, 0.2
        %v831 = vmul.f32 %v777, 0.2
        %v832 = vmul.f32 %v780, 0.2
        %v833 = vmul.f32 %v785, 0.2
        %v834 = vmul.f32 %v788, 0.2
        %v835 = vmul.f32 %v793, 0.2
        %v836 = vmul.f32 %v796, 0.2
        %v837 = vmul.f32 %v801, 0.2
        %v838 = vmul.f32 %v804, 0.2
        %v839 = vsel %vm807, %v745, %v823
        %v840 = vsel %vm808, %v748, %v824
        %v841 = vsel %vm809, %v753, %v825
        %v842 = vsel %vm810, %v756, %v826
        %v843 = vsel %vm811, %v761, %v827
        %v844 = vsel %vm812, %v764, %v828
        %v845 = vsel %vm813, %v769, %v829
        %v846 = vsel %vm814, %v772, %v830
        %v847 = vsel %vm815, %v777, %v831
        %v848 = vsel %vm816, %v780, %v832
        %v849 = vsel %vm817, %v785, %v833
        %v850 = vsel %vm818, %v788, %v834
        %v851 = vsel %vm819, %v793, %v835
        %v852 = vsel %vm820, %v796, %v836
        %v853 = vsel %vm821, %v801, %v837
        %v854 = vsel %vm822, %v804, %v838
        %v855 = vld [vmem:[%s7] sm:$0xf]
        %v856 = vld [vmem:[%s7 + $0x4] sm:$0xf]
        %v857 = vld [vmem:[%s7 + $0x8] sm:$0xf]
        %v858 = vld [vmem:[%s7 + $0xc] sm:$0xf]
        %v859 = vld [vmem:[%s7 + $0x10] sm:$0xf]
        %v860 = vld [vmem:[%s7 + $0x14] sm:$0xf]
        %v861 = vld [vmem:[%s7 + $0x18] sm:$0xf]
        %v862 = vld [vmem:[%s7 + $0x1c] sm:$0xf]
        %v863 = vld [vmem:[%s7 + $0x20] sm:$0xf]
        %v864 = vld [vmem:[%s7 + $0x24] sm:$0xf]
        %v865 = vld [vmem:[%s7 + $0x28] sm:$0xf]
        %v866 = vld [vmem:[%s7 + $0x2c] sm:$0xf]
        %v867 = vld [vmem:[%s7 + $0x30] sm:$0xf]
        %v868 = vld [vmem:[%s7 + $0x34] sm:$0xf]
        %v869 = vld [vmem:[%s7 + $0x38] sm:$0xf]
        %v870 = vld [vmem:[%s7 + $0x3c] sm:$0xf]
        %v871 = vunpack.c.l.bf16 %v855
        %v872 = vunpack.c.l.bf16 %v856
        %v873 = vunpack.c.l.bf16 %v857
        %v874 = vunpack.c.l.bf16 %v858
        %v875 = vunpack.c.l.bf16 %v859
        %v876 = vunpack.c.l.bf16 %v860
        %v877 = vunpack.c.l.bf16 %v861
        %v878 = vunpack.c.l.bf16 %v862
        %v879 = vunpack.c.l.bf16 %v863
        %v880 = vunpack.c.l.bf16 %v864
        %v881 = vunpack.c.l.bf16 %v865
        %v882 = vunpack.c.l.bf16 %v866
        %v883 = vunpack.c.l.bf16 %v867
        %v884 = vunpack.c.l.bf16 %v868
        %v885 = vunpack.c.l.bf16 %v869
        %v886 = vunpack.c.l.bf16 %v870
        %vm887 = vcmp.gt.f32.partialorder %v871, 0.0
        %vm888 = vcmp.gt.f32.partialorder %v872, 0.0
        %vm889 = vcmp.gt.f32.partialorder %v873, 0.0
        %vm890 = vcmp.gt.f32.partialorder %v874, 0.0
        %vm891 = vcmp.gt.f32.partialorder %v875, 0.0
        %vm892 = vcmp.gt.f32.partialorder %v876, 0.0
        %vm893 = vcmp.gt.f32.partialorder %v877, 0.0
        %vm894 = vcmp.gt.f32.partialorder %v878, 0.0
        %vm895 = vcmp.gt.f32.partialorder %v879, 0.0
        %vm896 = vcmp.gt.f32.partialorder %v880, 0.0
        %vm897 = vcmp.gt.f32.partialorder %v881, 0.0
        %vm898 = vcmp.gt.f32.partialorder %v882, 0.0
        %vm899 = vcmp.gt.f32.partialorder %v883, 0.0
        %vm900 = vcmp.gt.f32.partialorder %v884, 0.0
        %vm901 = vcmp.gt.f32.partialorder %v885, 0.0
        %vm902 = vcmp.gt.f32.partialorder %v886, 0.0
        %904 = vset.pattern.permute.xlu0 32
        %905 = vperm.xlu0 %904, %v839
        %v906 = vpop.permute.xlu0 %905
        %909 = vset.pattern.permute.xlu0 32
        %910 = vperm.xlu0 %909, %v840
        %v911 = vpop.permute.xlu0 %910
        %914 = vset.pattern.permute.xlu0 32
        %915 = vperm.xlu0 %914, %v841
        %v916 = vpop.permute.xlu0 %915
        %919 = vset.pattern.permute.xlu0 32
        %920 = vperm.xlu0 %919, %v842
        %v921 = vpop.permute.xlu0 %920
        %924 = vset.pattern.permute.xlu0 32
        %925 = vperm.xlu0 %924, %v843
        %v926 = vpop.permute.xlu0 %925
        %929 = vset.pattern.permute.xlu0 32
        %930 = vperm.xlu0 %929, %v844
        %v931 = vpop.permute.xlu0 %930
        %934 = vset.pattern.permute.xlu0 32
        %935 = vperm.xlu0 %934, %v845
        %v936 = vpop.permute.xlu0 %935
        %939 = vset.pattern.permute.xlu0 32
        %940 = vperm.xlu0 %939, %v846
        %v941 = vpop.permute.xlu0 %940
        %944 = vset.pattern.permute.xlu0 32
        %945 = vperm.xlu0 %944, %v847
        %v946 = vpop.permute.xlu0 %945
        %949 = vset.pattern.permute.xlu0 32
        %950 = vperm.xlu0 %949, %v848
        %v951 = vpop.permute.xlu0 %950
        %954 = vset.pattern.permute.xlu0 32
        %955 = vperm.xlu0 %954, %v849
        %v956 = vpop.permute.xlu0 %955
        %959 = vset.pattern.permute.xlu0 32
        %960 = vperm.xlu0 %959, %v850
        %v961 = vpop.permute.xlu0 %960
        %964 = vset.pattern.permute.xlu0 32
        %965 = vperm.xlu0 %964, %v851
        %v966 = vpop.permute.xlu0 %965
        %969 = vset.pattern.permute.xlu0 32
        %970 = vperm.xlu0 %969, %v852
        %v971 = vpop.permute.xlu0 %970
        %974 = vset.pattern.permute.xlu0 32
        %975 = vperm.xlu0 %974, %v853
        %v976 = vpop.permute.xlu0 %975
        %979 = vset.pattern.permute.xlu0 32
        %980 = vperm.xlu0 %979, %v854
        %v981 = vpop.permute.xlu0 %980
        %v983 = vsel %vm887, %v906, -1e+30
        %v984 = vsel %vm888, %v911, -1e+30
        %v985 = vsel %vm889, %v916, -1e+30
        %v986 = vsel %vm890, %v921, -1e+30
        %v987 = vsel %vm891, %v926, -1e+30
        %v988 = vsel %vm892, %v931, -1e+30
        %v989 = vsel %vm893, %v936, -1e+30
        %v990 = vsel %vm894, %v941, -1e+30
        %v991 = vsel %vm895, %v946, -1e+30
        %v992 = vsel %vm896, %v951, -1e+30
        %v993 = vsel %vm897, %v956, -1e+30
        %v994 = vsel %vm898, %v961, -1e+30
        %v995 = vsel %vm899, %v966, -1e+30
        %v996 = vsel %vm900, %v971, -1e+30
        %v997 = vsel %vm901, %v976, -1e+30
        %v998 = vsel %vm902, %v981, -1e+30
        %vm999 = vcmask 130048
        %v1000 = vsel %vm999, %v983, -inf
        %v1001 = vsel %vm999, %v984, -inf
        %v1002 = vsel %vm999, %v985, -inf
        %v1003 = vsel %vm999, %v986, -inf
        %v1004 = vsel %vm999, %v987, -inf
        %v1005 = vmax.f32 %v1000, %v1004
        %v1006 = vsel %vm999, %v988, -inf
        %v1007 = vmax.f32 %v1001, %v1006
        %v1008 = vsel %vm999, %v989, -inf
        %v1009 = vmax.f32 %v1002, %v1008
        %v1010 = vsel %vm999, %v990, -inf
        %v1011 = vmax.f32 %v1003, %v1010
        %v1012 = vsel %vm999, %v991, -inf
        %v1013 = vmax.f32 %v1005, %v1012
        %v1014 = vsel %vm999, %v992, -inf
        %v1015 = vmax.f32 %v1007, %v1014
        %v1016 = vsel %vm999, %v993, -inf
        %v1017 = vmax.f32 %v1009, %v1016
        %v1018 = vsel %vm999, %v994, -inf
        %v1019 = vmax.f32 %v1011, %v1018
        %v1020 = vsel %vm999, %v995, -inf
        %v1021 = vmax.f32 %v1013, %v1020
        %v1022 = vsel %vm999, %v996, -inf
        %v1023 = vmax.f32 %v1015, %v1022
        %v1024 = vsel %vm999, %v997, -inf
        %v1025 = vmax.f32 %v1017, %v1024
        %v1026 = vsel %vm999, %v998, -inf
        %v1027 = vmax.f32 %v1019, %v1026
        %v1028 = vmax.f32 %v1021, %v1023
        %v1029 = vmax.f32 %v1025, %v1027
        %v1030 = vmax.f32 %v1028, %v1029
        %v1031 = vrot.slane %v1030, 4
        %v1032 = vmax.f32 %v1030, %v1031
        %v1033 = vrot.slane %v1032, 2
        %v1034 = vmax.f32 %v1032, %v1033
        %v1035 = vrot.slane %v1034, 1
        %v1036 = vmax.f32 %v1034, %v1035
        %v1037 = vmul.f32 %v871, %v1036
        %v1038 = vmul.f32 %v872, %v1036
        %v1039 = vmul.f32 %v873, %v1036
        %v1040 = vmul.f32 %v874, %v1036
        %v1041 = vmul.f32 %v875, %v1036
        %v1042 = vmul.f32 %v876, %v1036
        %v1043 = vmul.f32 %v877, %v1036
        %v1044 = vmul.f32 %v878, %v1036
        %v1045 = vmul.f32 %v879, %v1036
        %v1046 = vmul.f32 %v880, %v1036
        %v1047 = vmul.f32 %v881, %v1036
        %v1048 = vmul.f32 %v882, %v1036
        %v1049 = vmul.f32 %v883, %v1036
        %v1050 = vmul.f32 %v884, %v1036
        %v1051 = vmul.f32 %v885, %v1036
        %v1052 = vmul.f32 %v886, %v1036
        %v1053 = vsel %vm999, %v1037, 0.0
        %1054 = vadd.xlane.f32.xlu0 %v1053
        %v1055 = vpop.xlane.xlu0 %1054
        %v1056 = vsel %vm999, %v1038, 0.0
        %1057 = vadd.xlane.f32.xlu0 %v1056
        %v1058 = vpop.xlane.xlu0 %1057
        %v1059 = vsel %vm999, %v1039, 0.0
        %1060 = vadd.xlane.f32.xlu0 %v1059
        %v1061 = vpop.xlane.xlu0 %1060
        %v1062 = vsel %vm999, %v1040, 0.0
        %1063 = vadd.xlane.f32.xlu0 %v1062
        %v1064 = vpop.xlane.xlu0 %1063
        %v1065 = vsel %vm999, %v1041, 0.0
        %1066 = vadd.xlane.f32.xlu0 %v1065
        %v1067 = vpop.xlane.xlu0 %1066
        %v1068 = vsel %vm999, %v1042, 0.0
        %1069 = vadd.xlane.f32.xlu0 %v1068
        %v1070 = vpop.xlane.xlu0 %1069
        %v1071 = vsel %vm999, %v1043, 0.0
        %1072 = vadd.xlane.f32.xlu0 %v1071
        %v1073 = vpop.xlane.xlu0 %1072
        %v1074 = vsel %vm999, %v1044, 0.0
        %1075 = vadd.xlane.f32.xlu0 %v1074
        %v1076 = vpop.xlane.xlu0 %1075
        %v1077 = vsel %vm999, %v1045, 0.0
        %1078 = vadd.xlane.f32.xlu0 %v1077
        %v1079 = vpop.xlane.xlu0 %1078
        %v1080 = vsel %vm999, %v1046, 0.0
        %1081 = vadd.xlane.f32.xlu0 %v1080
        %v1082 = vpop.xlane.xlu0 %1081
        %v1083 = vsel %vm999, %v1047, 0.0
        %1084 = vadd.xlane.f32.xlu0 %v1083
        %v1085 = vpop.xlane.xlu0 %1084
        %v1086 = vsel %vm999, %v1048, 0.0
        %1087 = vadd.xlane.f32.xlu0 %v1086
        %v1088 = vpop.xlane.xlu0 %1087
        %v1089 = vsel %vm999, %v1049, 0.0
        %1090 = vadd.xlane.f32.xlu0 %v1089
        %v1091 = vpop.xlane.xlu0 %1090
        %v1092 = vsel %vm999, %v1050, 0.0
        %1093 = vadd.xlane.f32.xlu0 %v1092
        %v1094 = vpop.xlane.xlu0 %1093
        %v1095 = vsel %vm999, %v1051, 0.0
        %1096 = vadd.xlane.f32.xlu0 %v1095
        %v1097 = vpop.xlane.xlu0 %1096
        %v1098 = vsel %vm999, %v1052, 0.0
        %1099 = vadd.xlane.f32.xlu0 %v1098
        %v1100 = vpop.xlane.xlu0 %1099
        %v1101 = vsub.f32 %v839, %v1055
        %v1102 = vsub.f32 %v840, %v1058
        %v1103 = vsub.f32 %v841, %v1061
        %v1104 = vsub.f32 %v842, %v1064
        %v1105 = vsub.f32 %v843, %v1067
        %v1106 = vsub.f32 %v844, %v1070
        %v1107 = vsub.f32 %v845, %v1073
        %v1108 = vsub.f32 %v846, %v1076
        %v1109 = vsub.f32 %v847, %v1079
        %v1110 = vsub.f32 %v848, %v1082
        %v1111 = vsub.f32 %v849, %v1085
        %v1112 = vsub.f32 %v850, %v1088
        %v1113 = vsub.f32 %v851, %v1091
        %v1114 = vsub.f32 %v852, %v1094
        %v1115 = vsub.f32 %v853, %v1097
        %v1116 = vsub.f32 %v854, %v1100
        %v1117 = vmul.f32 %v1101, 1.442695
        %v1118 = vpow.pop %v1117
        %v1119 = vmul.f32 %v1102, 1.442695
        %v1120 = vpow.pop %v1119
        %v1121 = vmul.f32 %v1103, 1.442695
        %v1122 = vpow.pop %v1121
        %v1123 = vmul.f32 %v1104, 1.442695
        %v1124 = vpow.pop %v1123
        %v1125 = vmul.f32 %v1105, 1.442695
        %v1126 = vpow.pop %v1125
        %v1127 = vmul.f32 %v1106, 1.442695
        %v1128 = vpow.pop %v1127
        %v1129 = vmul.f32 %v1107, 1.442695
        %v1130 = vpow.pop %v1129
        %v1131 = vmul.f32 %v1108, 1.442695
        %v1132 = vpow.pop %v1131
        %v1133 = vmul.f32 %v1109, 1.442695
        %v1134 = vpow.pop %v1133
        %v1135 = vmul.f32 %v1110, 1.442695
        %v1136 = vpow.pop %v1135
        %v1137 = vmul.f32 %v1111, 1.442695
        %v1138 = vpow.pop %v1137
        %v1139 = vmul.f32 %v1112, 1.442695
        %v1140 = vpow.pop %v1139
        %v1141 = vmul.f32 %v1113, 1.442695
        %v1142 = vpow.pop %v1141
        %v1143 = vmul.f32 %v1114, 1.442695
        %v1144 = vpow.pop %v1143
        %v1145 = vmul.f32 %v1115, 1.442695
        %v1146 = vpow.pop %v1145
        %v1147 = vmul.f32 %v1116, 1.442695
        %v1148 = vpow.pop %v1147
        %1150 = vset.pattern.permute.xlu0 32
        %1151 = vperm.xlu0 %1150, %v1118
        %v1152 = vpop.permute.xlu0 %1151
        %1155 = vset.pattern.permute.xlu0 32
        %1156 = vperm.xlu0 %1155, %v1120
        %v1157 = vpop.permute.xlu0 %1156
        %1160 = vset.pattern.permute.xlu0 32
        %1161 = vperm.xlu0 %1160, %v1122
        %v1162 = vpop.permute.xlu0 %1161
        %1165 = vset.pattern.permute.xlu0 32
        %1166 = vperm.xlu0 %1165, %v1124
        %v1167 = vpop.permute.xlu0 %1166
        %1170 = vset.pattern.permute.xlu0 32
        %1171 = vperm.xlu0 %1170, %v1126
        %v1172 = vpop.permute.xlu0 %1171
        %1175 = vset.pattern.permute.xlu0 32
        %1176 = vperm.xlu0 %1175, %v1128
        %v1177 = vpop.permute.xlu0 %1176
        %1180 = vset.pattern.permute.xlu0 32
        %1181 = vperm.xlu0 %1180, %v1130
        %v1182 = vpop.permute.xlu0 %1181
        %1185 = vset.pattern.permute.xlu0 32
        %1186 = vperm.xlu0 %1185, %v1132
        %v1187 = vpop.permute.xlu0 %1186
        %1190 = vset.pattern.permute.xlu0 32
        %1191 = vperm.xlu0 %1190, %v1134
        %v1192 = vpop.permute.xlu0 %1191
        %1195 = vset.pattern.permute.xlu0 32
        %1196 = vperm.xlu0 %1195, %v1136
        %v1197 = vpop.permute.xlu0 %1196
        %1200 = vset.pattern.permute.xlu0 32
        %1201 = vperm.xlu0 %1200, %v1138
        %v1202 = vpop.permute.xlu0 %1201
        %1205 = vset.pattern.permute.xlu0 32
        %1206 = vperm.xlu0 %1205, %v1140
        %v1207 = vpop.permute.xlu0 %1206
        %1210 = vset.pattern.permute.xlu0 32
        %1211 = vperm.xlu0 %1210, %v1142
        %v1212 = vpop.permute.xlu0 %1211
        %1215 = vset.pattern.permute.xlu0 32
        %1216 = vperm.xlu0 %1215, %v1144
        %v1217 = vpop.permute.xlu0 %1216
        %1220 = vset.pattern.permute.xlu0 32
        %1221 = vperm.xlu0 %1220, %v1146
        %v1222 = vpop.permute.xlu0 %1221
        %1225 = vset.pattern.permute.xlu0 32
        %1226 = vperm.xlu0 %1225, %v1148
        %v1227 = vpop.permute.xlu0 %1226
        %v1229 = vmul.f32 %v871, %v1152
        %v1230 = vmul.f32 %v872, %v1157
        %v1231 = vmul.f32 %v873, %v1162
        %v1232 = vmul.f32 %v874, %v1167
        %v1233 = vmul.f32 %v875, %v1172
        %v1234 = vmul.f32 %v876, %v1177
        %v1235 = vmul.f32 %v877, %v1182
        %v1236 = vmul.f32 %v878, %v1187
        %v1237 = vmul.f32 %v879, %v1192
        %v1238 = vmul.f32 %v880, %v1197
        %v1239 = vmul.f32 %v881, %v1202
        %v1240 = vmul.f32 %v882, %v1207
        %v1241 = vmul.f32 %v883, %v1212
        %v1242 = vmul.f32 %v884, %v1217
        %v1243 = vmul.f32 %v885, %v1222
        %v1244 = vmul.f32 %v886, %v1227
        %v1245 = vsel %vm999, %v1229, 0.0
        %v1246 = vsel %vm999, %v1230, 0.0
        %v1247 = vadd.f32 %v1245, %v1246
        %v1248 = vsel %vm999, %v1231, 0.0
        %v1249 = vadd.f32 %v1247, %v1248
        %v1250 = vsel %vm999, %v1232, 0.0
        %v1251 = vadd.f32 %v1249, %v1250
        %v1252 = vsel %vm999, %v1233, 0.0
        %v1253 = vadd.f32 %v1251, %v1252
        %v1254 = vsel %vm999, %v1234, 0.0
        %v1255 = vadd.f32 %v1253, %v1254
        %v1256 = vsel %vm999, %v1235, 0.0
        %v1257 = vadd.f32 %v1255, %v1256
        %v1258 = vsel %vm999, %v1236, 0.0
        %v1259 = vadd.f32 %v1257, %v1258
        %v1260 = vsel %vm999, %v1237, 0.0
        %v1261 = vadd.f32 %v1259, %v1260
        %v1262 = vsel %vm999, %v1238, 0.0
        %v1263 = vadd.f32 %v1261, %v1262
        %v1264 = vsel %vm999, %v1239, 0.0
        %v1265 = vadd.f32 %v1263, %v1264
        %v1266 = vsel %vm999, %v1240, 0.0
        %v1267 = vadd.f32 %v1265, %v1266
        %v1268 = vsel %vm999, %v1241, 0.0
        %v1269 = vadd.f32 %v1267, %v1268
        %v1270 = vsel %vm999, %v1242, 0.0
        %v1271 = vadd.f32 %v1269, %v1270
        %v1272 = vsel %vm999, %v1243, 0.0
        %v1273 = vadd.f32 %v1271, %v1272
        %v1274 = vsel %vm999, %v1244, 0.0
        %v1275 = vadd.f32 %v1273, %v1274
        %v1276 = vrot.slane %v1275, 4
        %v1277 = vadd.f32 %v1275, %v1276
        %v1278 = vrot.slane %v1277, 2
        %v1279 = vadd.f32 %v1277, %v1278
        %v1280 = vrot.slane %v1279, 1
        %v1281 = vadd.f32 %v1279, %v1280
        %v1282 = vmul.f32 %v871, %v1281
        %v1283 = vmul.f32 %v872, %v1281
        %v1284 = vmul.f32 %v873, %v1281
        %v1285 = vmul.f32 %v874, %v1281
        %v1286 = vmul.f32 %v875, %v1281
        %v1287 = vmul.f32 %v876, %v1281
        %v1288 = vmul.f32 %v877, %v1281
        %v1289 = vmul.f32 %v878, %v1281
        %v1290 = vmul.f32 %v879, %v1281
        %v1291 = vmul.f32 %v880, %v1281
        %v1292 = vmul.f32 %v881, %v1281
        %v1293 = vmul.f32 %v882, %v1281
        %v1294 = vmul.f32 %v883, %v1281
        %v1295 = vmul.f32 %v884, %v1281
        %v1296 = vmul.f32 %v885, %v1281
        %v1297 = vmul.f32 %v886, %v1281
        %v1298 = vsel %vm999, %v1282, 0.0
        %1299 = vadd.xlane.f32.xlu0 %v1298
        %v1300 = vpop.xlane.xlu0 %1299
        %v1301 = vsel %vm999, %v1283, 0.0
        %1302 = vadd.xlane.f32.xlu0 %v1301
        %v1303 = vpop.xlane.xlu0 %1302
        %v1304 = vsel %vm999, %v1284, 0.0
        %1305 = vadd.xlane.f32.xlu0 %v1304
        %v1306 = vpop.xlane.xlu0 %1305
        %v1307 = vsel %vm999, %v1285, 0.0
        %1308 = vadd.xlane.f32.xlu0 %v1307
        %v1309 = vpop.xlane.xlu0 %1308
        %v1310 = vsel %vm999, %v1286, 0.0
        %1311 = vadd.xlane.f32.xlu0 %v1310
        %v1312 = vpop.xlane.xlu0 %1311
        %v1313 = vsel %vm999, %v1287, 0.0
        %1314 = vadd.xlane.f32.xlu0 %v1313
        %v1315 = vpop.xlane.xlu0 %1314
        %v1316 = vsel %vm999, %v1288, 0.0
        %1317 = vadd.xlane.f32.xlu0 %v1316
        %v1318 = vpop.xlane.xlu0 %1317
        %v1319 = vsel %vm999, %v1289, 0.0
        %1320 = vadd.xlane.f32.xlu0 %v1319
        %v1321 = vpop.xlane.xlu0 %1320
        %v1322 = vsel %vm999, %v1290, 0.0
        %1323 = vadd.xlane.f32.xlu0 %v1322
        %v1324 = vpop.xlane.xlu0 %1323
        %v1325 = vsel %vm999, %v1291, 0.0
        %1326 = vadd.xlane.f32.xlu0 %v1325
        %v1327 = vpop.xlane.xlu0 %1326
        %v1328 = vsel %vm999, %v1292, 0.0
        %1329 = vadd.xlane.f32.xlu0 %v1328
        %v1330 = vpop.xlane.xlu0 %1329
        %v1331 = vsel %vm999, %v1293, 0.0
        %1332 = vadd.xlane.f32.xlu0 %v1331
        %v1333 = vpop.xlane.xlu0 %1332
        %v1334 = vsel %vm999, %v1294, 0.0
        %1335 = vadd.xlane.f32.xlu0 %v1334
        %v1336 = vpop.xlane.xlu0 %1335
        %v1337 = vsel %vm999, %v1295, 0.0
        %1338 = vadd.xlane.f32.xlu0 %v1337
        %v1339 = vpop.xlane.xlu0 %1338
        %v1340 = vsel %vm999, %v1296, 0.0
        %1341 = vadd.xlane.f32.xlu0 %v1340
        %v1342 = vpop.xlane.xlu0 %1341
        %v1343 = vsel %vm999, %v1297, 0.0
        %1344 = vadd.xlane.f32.xlu0 %v1343
        %v1345 = vpop.xlane.xlu0 %1344
        %v1346 = vadd.f32 %v1300, 1e-16
        %v1347 = vadd.f32 %v1303, 1e-16
        %v1348 = vadd.f32 %v1306, 1e-16
        %v1349 = vadd.f32 %v1309, 1e-16
        %v1350 = vadd.f32 %v1312, 1e-16
        %v1351 = vadd.f32 %v1315, 1e-16
        %v1352 = vadd.f32 %v1318, 1e-16
        %v1353 = vadd.f32 %v1321, 1e-16
        %v1354 = vadd.f32 %v1324, 1e-16
        %v1355 = vadd.f32 %v1327, 1e-16
        %v1356 = vadd.f32 %v1330, 1e-16
        %v1357 = vadd.f32 %v1333, 1e-16
        %v1358 = vadd.f32 %v1336, 1e-16
        %v1359 = vadd.f32 %v1339, 1e-16
        %v1360 = vadd.f32 %v1342, 1e-16
        %v1361 = vadd.f32 %v1345, 1e-16
        %v1362 = vrcp.pop %v1346
        %v1363 = vrcp.pop %v1347
        %v1364 = vrcp.pop %v1348
        %v1365 = vrcp.pop %v1349
        %v1366 = vrcp.pop %v1350
        %v1367 = vrcp.pop %v1351
        %v1368 = vrcp.pop %v1352
        %v1369 = vrcp.pop %v1353
        %v1370 = vrcp.pop %v1354
        %v1371 = vrcp.pop %v1355
        %v1372 = vrcp.pop %v1356
        %v1373 = vrcp.pop %v1357
        %v1374 = vrcp.pop %v1358
        %v1375 = vrcp.pop %v1359
        %v1376 = vrcp.pop %v1360
        %v1377 = vrcp.pop %v1361
        %v1378 = vmul.f32 %v1118, %v1362
        %v1379 = vmul.f32 %v1120, %v1363
        %v1380 = vmul.f32 %v1122, %v1364
        %v1381 = vmul.f32 %v1124, %v1365
        %v1382 = vmul.f32 %v1126, %v1366
        %v1383 = vmul.f32 %v1128, %v1367
        %v1384 = vmul.f32 %v1130, %v1368
        %v1385 = vmul.f32 %v1132, %v1369
        %v1386 = vmul.f32 %v1134, %v1370
        %v1387 = vmul.f32 %v1136, %v1371
        %v1388 = vmul.f32 %v1138, %v1372
        %v1389 = vmul.f32 %v1140, %v1373
        %v1390 = vmul.f32 %v1142, %v1374
        %v1391 = vmul.f32 %v1144, %v1375
        %v1392 = vmul.f32 %v1146, %v1376
        %v1393 = vmul.f32 %v1148, %v1377
        %v1394 = vlaneseq
        %v1395 = vshrl.u32 %v1394, 7
        %v1396 = vadd.s32 %v1395, 8
        %v1397 = vadd.s32 %v1395, 16
        %v1398 = vadd.s32 %v1395, 24
        %v1399 = vadd.s32 %v1395, 32
        %v1400 = vadd.s32 %v1395, 40
        %v1401 = vadd.s32 %v1395, 48
        %v1402 = vadd.s32 %v1395, 56
        %v1403 = vadd.s32 %v1395, 64
        %v1404 = vadd.s32 %v1395, 72
        %v1405 = vadd.s32 %v1395, 80
        %v1406 = vadd.s32 %v1395, 88
        %v1407 = vadd.s32 %v1395, 96
        %v1408 = vadd.s32 %v1395, 104
        %v1409 = vadd.s32 %v1395, 112
        %v1410 = vadd.s32 %v1395, 120
        %v1411 = vcvt.s32.f32 %v1395
        %v1412 = vcvt.s32.f32 %v1396
        %v1413 = vcvt.s32.f32 %v1397
        %v1414 = vcvt.s32.f32 %v1398
        %v1415 = vcvt.s32.f32 %v1399
        %v1416 = vcvt.s32.f32 %v1400
        %v1417 = vcvt.s32.f32 %v1401
        %v1418 = vcvt.s32.f32 %v1402
        %v1419 = vcvt.s32.f32 %v1403
        %v1420 = vcvt.s32.f32 %v1404
        %v1421 = vcvt.s32.f32 %v1405
        %v1422 = vcvt.s32.f32 %v1406
        %v1423 = vcvt.s32.f32 %v1407
        %v1424 = vcvt.s32.f32 %v1408
        %v1425 = vcvt.s32.f32 %v1409
        %v1426 = vcvt.s32.f32 %v1410
        %v1427 = vmul.f32 %v1411, 1e-06
        %v1428 = vmul.f32 %v1412, 1e-06
        %v1429 = vmul.f32 %v1413, 1e-06
        %v1430 = vmul.f32 %v1414, 1e-06
        %v1431 = vmul.f32 %v1415, 1e-06
        %v1432 = vmul.f32 %v1416, 1e-06
        %v1433 = vmul.f32 %v1417, 1e-06
        %v1434 = vmul.f32 %v1418, 1e-06
        %v1435 = vmul.f32 %v1419, 1e-06
        %v1436 = vmul.f32 %v1420, 1e-06
        %v1437 = vmul.f32 %v1421, 1e-06
        %v1438 = vmul.f32 %v1422, 1e-06
        %v1439 = vmul.f32 %v1423, 1e-06
        %v1440 = vmul.f32 %v1424, 1e-06
        %v1441 = vmul.f32 %v1425, 1e-06
        %v1442 = vmul.f32 %v1426, 1e-06
        %v1443 = vsub.f32 %v1378, %v1427
        %v1444 = vsub.f32 %v1379, %v1428
        %v1445 = vsub.f32 %v1380, %v1429
        %v1446 = vsub.f32 %v1381, %v1430
        %v1447 = vsub.f32 %v1382, %v1431
        %v1448 = vsub.f32 %v1383, %v1432
        %v1449 = vsub.f32 %v1384, %v1433
        %v1450 = vsub.f32 %v1385, %v1434
        %v1451 = vsub.f32 %v1386, %v1435
        %v1452 = vsub.f32 %v1387, %v1436
        %v1453 = vsub.f32 %v1388, %v1437
        %v1454 = vsub.f32 %v1389, %v1438
        %v1455 = vsub.f32 %v1390, %v1439
        %v1456 = vsub.f32 %v1391, %v1440
        %v1457 = vsub.f32 %v1392, %v1441
        %v1458 = vsub.f32 %v1393, %v1442
        %v1459 = vlaneseq
        %v1460 = vand.u32 %v1459, 127
        %vm1461 = vcmp.eq.s32.totalorder %v1395, %v1460
        %vm1462 = vcmp.eq.s32.totalorder %v1396, %v1460
        %vm1463 = vcmp.eq.s32.totalorder %v1397, %v1460
        %vm1464 = vcmp.eq.s32.totalorder %v1398, %v1460
        %vm1465 = vcmp.eq.s32.totalorder %v1399, %v1460
        %vm1466 = vcmp.eq.s32.totalorder %v1400, %v1460
        %vm1467 = vcmp.eq.s32.totalorder %v1401, %v1460
        %vm1468 = vcmp.eq.s32.totalorder %v1402, %v1460
        %vm1469 = vcmp.eq.s32.totalorder %v1403, %v1460
        %vm1470 = vcmp.eq.s32.totalorder %v1404, %v1460
        %vm1471 = vcmp.eq.s32.totalorder %v1405, %v1460
        %vm1472 = vcmp.eq.s32.totalorder %v1406, %v1460
        %vm1473 = vcmp.eq.s32.totalorder %v1407, %v1460
        %vm1474 = vcmp.eq.s32.totalorder %v1408, %v1460
        %vm1475 = vcmp.eq.s32.totalorder %v1409, %v1460
        %vm1476 = vcmp.eq.s32.totalorder %v1410, %v1460
        %1478 = vset.pattern.permute.xlu0 32
        %1479 = vperm.xlu0 %1478, %v1443
        %v1480 = vpop.permute.xlu0 %1479
        %1483 = vset.pattern.permute.xlu0 32
        %1484 = vperm.xlu0 %1483, %v1444
        %v1485 = vpop.permute.xlu0 %1484
        %1488 = vset.pattern.permute.xlu0 32
        %1489 = vperm.xlu0 %1488, %v1445
        %v1490 = vpop.permute.xlu0 %1489
        %1493 = vset.pattern.permute.xlu0 32
        %1494 = vperm.xlu0 %1493, %v1446
        %v1495 = vpop.permute.xlu0 %1494
        %1498 = vset.pattern.permute.xlu0 32
        %1499 = vperm.xlu0 %1498, %v1447
        %v1500 = vpop.permute.xlu0 %1499
        %1503 = vset.pattern.permute.xlu0 32
        %1504 = vperm.xlu0 %1503, %v1448
        %v1505 = vpop.permute.xlu0 %1504
        %1508 = vset.pattern.permute.xlu0 32
        %1509 = vperm.xlu0 %1508, %v1449
        %v1510 = vpop.permute.xlu0 %1509
        %1513 = vset.pattern.permute.xlu0 32
        %1514 = vperm.xlu0 %1513, %v1450
        %v1515 = vpop.permute.xlu0 %1514
        %1518 = vset.pattern.permute.xlu0 32
        %1519 = vperm.xlu0 %1518, %v1451
        %v1520 = vpop.permute.xlu0 %1519
        %1523 = vset.pattern.permute.xlu0 32
        %1524 = vperm.xlu0 %1523, %v1452
        %v1525 = vpop.permute.xlu0 %1524
        %1528 = vset.pattern.permute.xlu0 32
        %1529 = vperm.xlu0 %1528, %v1453
        %v1530 = vpop.permute.xlu0 %1529
        %1533 = vset.pattern.permute.xlu0 32
        %1534 = vperm.xlu0 %1533, %v1454
        %v1535 = vpop.permute.xlu0 %1534
        %1538 = vset.pattern.permute.xlu0 32
        %1539 = vperm.xlu0 %1538, %v1455
        %v1540 = vpop.permute.xlu0 %1539
        %1543 = vset.pattern.permute.xlu0 32
        %1544 = vperm.xlu0 %1543, %v1456
        %v1545 = vpop.permute.xlu0 %1544
        %1548 = vset.pattern.permute.xlu0 32
        %1549 = vperm.xlu0 %1548, %v1457
        %v1550 = vpop.permute.xlu0 %1549
        %1553 = vset.pattern.permute.xlu0 32
        %1554 = vperm.xlu0 %1553, %v1458
        %v1555 = vpop.permute.xlu0 %1554
        %v1557 = vsel %vm1461, %v1480, 0.0
        %v1558 = vsel %vm1462, %v1485, 0.0
        %v1559 = vsel %vm1463, %v1490, 0.0
        %v1560 = vsel %vm1464, %v1495, 0.0
        %v1561 = vsel %vm1465, %v1500, 0.0
        %v1562 = vsel %vm1466, %v1505, 0.0
        %v1563 = vsel %vm1467, %v1510, 0.0
        %v1564 = vsel %vm1468, %v1515, 0.0
        %v1565 = vsel %vm1469, %v1520, 0.0
        %v1566 = vsel %vm1470, %v1525, 0.0
        %v1567 = vsel %vm1471, %v1530, 0.0
        %v1568 = vsel %vm1472, %v1535, 0.0
        %v1569 = vsel %vm1473, %v1540, 0.0
        %v1570 = vsel %vm1474, %v1545, 0.0
        %v1571 = vsel %vm1475, %v1550, 0.0
        %v1572 = vsel %vm1476, %v1555, 0.0
        %v1573 = vadd.f32 %v1557, %v1558
        %v1574 = vadd.f32 %v1573, %v1559
        %v1575 = vadd.f32 %v1574, %v1560
        %v1576 = vadd.f32 %v1575, %v1561
        %v1577 = vadd.f32 %v1576, %v1562
        %v1578 = vadd.f32 %v1577, %v1563
        %v1579 = vadd.f32 %v1578, %v1564
        %v1580 = vadd.f32 %v1579, %v1565
        %v1581 = vadd.f32 %v1580, %v1566
        %v1582 = vadd.f32 %v1581, %v1567
        %v1583 = vadd.f32 %v1582, %v1568
        %v1584 = vadd.f32 %v1583, %v1569
        %v1585 = vadd.f32 %v1584, %v1570
        %v1586 = vadd.f32 %v1585, %v1571
        %v1587 = vadd.f32 %v1586, %v1572
        %v1588 = vrot.slane %v1587, 4
        %v1589 = vadd.f32 %v1587, %v1588
        %v1590 = vrot.slane %v1589, 2
        %v1591 = vadd.f32 %v1589, %v1590
        %v1592 = vrot.slane %v1591, 1
        %v1593 = vadd.f32 %v1591, %v1592
        %vm1594 = vcmp.gt.f32.partialorder %v1593, %v1480
        %vm1595 = vcmp.gt.f32.partialorder %v1593, %v1485
        %vm1596 = vcmp.gt.f32.partialorder %v1593, %v1490
        %vm1597 = vcmp.gt.f32.partialorder %v1593, %v1495
        %vm1598 = vcmp.gt.f32.partialorder %v1593, %v1500
        %vm1599 = vcmp.gt.f32.partialorder %v1593, %v1505
        %vm1600 = vcmp.gt.f32.partialorder %v1593, %v1510
        %vm1601 = vcmp.gt.f32.partialorder %v1593, %v1515
        %vm1602 = vcmp.gt.f32.partialorder %v1593, %v1520
        %vm1603 = vcmp.gt.f32.partialorder %v1593, %v1525
        %vm1604 = vcmp.gt.f32.partialorder %v1593, %v1530
        %vm1605 = vcmp.gt.f32.partialorder %v1593, %v1535
        %vm1606 = vcmp.gt.f32.partialorder %v1593, %v1540
        %vm1607 = vcmp.gt.f32.partialorder %v1593, %v1545
        %vm1608 = vcmp.gt.f32.partialorder %v1593, %v1550
        %vm1609 = vcmp.gt.f32.partialorder %v1593, %v1555
        %v1610 = vsel %vm1594, 1, 0
        %v1611 = vsel %vm1595, 1, 0
        %v1612 = vsel %vm1596, 1, 0
        %v1613 = vsel %vm1597, 1, 0
        %v1614 = vsel %vm1598, 1, 0
        %v1615 = vsel %vm1599, 1, 0
        %v1616 = vsel %vm1600, 1, 0
        %v1617 = vsel %vm1601, 1, 0
        %v1618 = vsel %vm1602, 1, 0
        %v1619 = vsel %vm1603, 1, 0
        %v1620 = vsel %vm1604, 1, 0
        %v1621 = vsel %vm1605, 1, 0
        %v1622 = vsel %vm1606, 1, 0
        %v1623 = vsel %vm1607, 1, 0
        %v1624 = vsel %vm1608, 1, 0
        %v1625 = vsel %vm1609, 1, 0
        %v1626 = vcvt.s32.f32 %v1610
        %v1627 = vcvt.s32.f32 %v1611
        %v1628 = vcvt.s32.f32 %v1612
        %v1629 = vcvt.s32.f32 %v1613
        %v1630 = vcvt.s32.f32 %v1614
        %v1631 = vcvt.s32.f32 %v1615
        %v1632 = vcvt.s32.f32 %v1616
        %v1633 = vcvt.s32.f32 %v1617
        %v1634 = vcvt.s32.f32 %v1618
        %v1635 = vcvt.s32.f32 %v1619
        %v1636 = vcvt.s32.f32 %v1620
        %v1637 = vcvt.s32.f32 %v1621
        %v1638 = vcvt.s32.f32 %v1622
        %v1639 = vcvt.s32.f32 %v1623
        %v1640 = vcvt.s32.f32 %v1624
        %v1641 = vcvt.s32.f32 %v1625
        %1642 = vadd.xlane.f32.xlu0 %v1626
        %v1643 = vpop.xlane.xlu0 %1642
        %1644 = vadd.xlane.f32.xlu0 %v1627
        %v1645 = vpop.xlane.xlu0 %1644
        %1646 = vadd.xlane.f32.xlu0 %v1628
        %v1647 = vpop.xlane.xlu0 %1646
        %1648 = vadd.xlane.f32.xlu0 %v1629
        %v1649 = vpop.xlane.xlu0 %1648
        %1650 = vadd.xlane.f32.xlu0 %v1630
        %v1651 = vpop.xlane.xlu0 %1650
        %1652 = vadd.xlane.f32.xlu0 %v1631
        %v1653 = vpop.xlane.xlu0 %1652
        %1654 = vadd.xlane.f32.xlu0 %v1632
        %v1655 = vpop.xlane.xlu0 %1654
        %1656 = vadd.xlane.f32.xlu0 %v1633
        %v1657 = vpop.xlane.xlu0 %1656
        %1658 = vadd.xlane.f32.xlu0 %v1634
        %v1659 = vpop.xlane.xlu0 %1658
        %1660 = vadd.xlane.f32.xlu0 %v1635
        %v1661 = vpop.xlane.xlu0 %1660
        %1662 = vadd.xlane.f32.xlu0 %v1636
        %v1663 = vpop.xlane.xlu0 %1662
        %1664 = vadd.xlane.f32.xlu0 %v1637
        %v1665 = vpop.xlane.xlu0 %1664
        %1666 = vadd.xlane.f32.xlu0 %v1638
        %v1667 = vpop.xlane.xlu0 %1666
        %1668 = vadd.xlane.f32.xlu0 %v1639
        %v1669 = vpop.xlane.xlu0 %1668
        %1670 = vadd.xlane.f32.xlu0 %v1640
        %v1671 = vpop.xlane.xlu0 %1670
        %1672 = vadd.xlane.f32.xlu0 %v1641
        %v1673 = vpop.xlane.xlu0 %1672
        %vm1674 = vcmp.lt.f32.partialorder %v1643, 64.0
        %vm1675 = vcmp.lt.f32.partialorder %v1645, 64.0
        %vm1676 = vcmp.lt.f32.partialorder %v1647, 64.0
        %vm1677 = vcmp.lt.f32.partialorder %v1649, 64.0
        %vm1678 = vcmp.lt.f32.partialorder %v1651, 64.0
        %vm1679 = vcmp.lt.f32.partialorder %v1653, 64.0
        %vm1680 = vcmp.lt.f32.partialorder %v1655, 64.0
        %vm1681 = vcmp.lt.f32.partialorder %v1657, 64.0
        %vm1682 = vcmp.lt.f32.partialorder %v1659, 64.0
        %vm1683 = vcmp.lt.f32.partialorder %v1661, 64.0
        %vm1684 = vcmp.lt.f32.partialorder %v1663, 64.0
        %vm1685 = vcmp.lt.f32.partialorder %v1665, 64.0
        %vm1686 = vcmp.lt.f32.partialorder %v1667, 64.0
        %vm1687 = vcmp.lt.f32.partialorder %v1669, 64.0
        %vm1688 = vcmp.lt.f32.partialorder %v1671, 64.0
        %vm1689 = vcmp.lt.f32.partialorder %v1673, 64.0
        %v1690 = vsel %vm1674, %v1378, 0.0
        %v1691 = vsel %vm1675, %v1379, 0.0
        %v1692 = vsel %vm1676, %v1380, 0.0
        %v1693 = vsel %vm1677, %v1381, 0.0
        %v1694 = vsel %vm1678, %v1382, 0.0
        %v1695 = vsel %vm1679, %v1383, 0.0
        %v1696 = vsel %vm1680, %v1384, 0.0
        %v1697 = vsel %vm1681, %v1385, 0.0
        %v1698 = vsel %vm1682, %v1386, 0.0
        %v1699 = vsel %vm1683, %v1387, 0.0
        %v1700 = vsel %vm1684, %v1388, 0.0
        %v1701 = vsel %vm1685, %v1389, 0.0
        %v1702 = vsel %vm1686, %v1390, 0.0
        %v1703 = vsel %vm1687, %v1391, 0.0
        %v1704 = vsel %vm1688, %v1392, 0.0
        %v1705 = vsel %vm1689, %v1393, 0.0
        %1707 = vset.pattern.permute.xlu0 32
        %1708 = vperm.xlu0 %1707, %v1690
        %v1709 = vpop.permute.xlu0 %1708
        %1712 = vset.pattern.permute.xlu0 32
        %1713 = vperm.xlu0 %1712, %v1691
        %v1714 = vpop.permute.xlu0 %1713
        %1717 = vset.pattern.permute.xlu0 32
        %1718 = vperm.xlu0 %1717, %v1692
        %v1719 = vpop.permute.xlu0 %1718
        %1722 = vset.pattern.permute.xlu0 32
        %1723 = vperm.xlu0 %1722, %v1693
        %v1724 = vpop.permute.xlu0 %1723
        %1727 = vset.pattern.permute.xlu0 32
        %1728 = vperm.xlu0 %1727, %v1694
        %v1729 = vpop.permute.xlu0 %1728
        %1732 = vset.pattern.permute.xlu0 32
        %1733 = vperm.xlu0 %1732, %v1695
        %v1734 = vpop.permute.xlu0 %1733
        %1737 = vset.pattern.permute.xlu0 32
        %1738 = vperm.xlu0 %1737, %v1696
        %v1739 = vpop.permute.xlu0 %1738
        %1742 = vset.pattern.permute.xlu0 32
        %1743 = vperm.xlu0 %1742, %v1697
        %v1744 = vpop.permute.xlu0 %1743
        %1747 = vset.pattern.permute.xlu0 32
        %1748 = vperm.xlu0 %1747, %v1698
        %v1749 = vpop.permute.xlu0 %1748
        %1752 = vset.pattern.permute.xlu0 32
        %1753 = vperm.xlu0 %1752, %v1699
        %v1754 = vpop.permute.xlu0 %1753
        %1757 = vset.pattern.permute.xlu0 32
        %1758 = vperm.xlu0 %1757, %v1700
        %v1759 = vpop.permute.xlu0 %1758
        %1762 = vset.pattern.permute.xlu0 32
        %1763 = vperm.xlu0 %1762, %v1701
        %v1764 = vpop.permute.xlu0 %1763
        %1767 = vset.pattern.permute.xlu0 32
        %1768 = vperm.xlu0 %1767, %v1702
        %v1769 = vpop.permute.xlu0 %1768
        %1772 = vset.pattern.permute.xlu0 32
        %1773 = vperm.xlu0 %1772, %v1703
        %v1774 = vpop.permute.xlu0 %1773
        %1777 = vset.pattern.permute.xlu0 32
        %1778 = vperm.xlu0 %1777, %v1704
        %v1779 = vpop.permute.xlu0 %1778
        %1782 = vset.pattern.permute.xlu0 32
        %1783 = vperm.xlu0 %1782, %v1705
        %v1784 = vpop.permute.xlu0 %1783
        %v1786 = vmul.f32 %v1709, %v745
        %v1787 = vmul.f32 %v1714, %v748
        %v1788 = vmul.f32 %v1719, %v753
        %v1789 = vmul.f32 %v1724, %v756
        %v1790 = vmul.f32 %v1729, %v761
        %v1791 = vmul.f32 %v1734, %v764
        %v1792 = vmul.f32 %v1739, %v769
        %v1793 = vmul.f32 %v1744, %v772
        %v1794 = vmul.f32 %v1749, %v777
        %v1795 = vmul.f32 %v1754, %v780
        %v1796 = vmul.f32 %v1759, %v785
        %v1797 = vmul.f32 %v1764, %v788
        %v1798 = vmul.f32 %v1769, %v793
        %v1799 = vmul.f32 %v1774, %v796
        %v1800 = vmul.f32 %v1779, %v801
        %v1801 = vmul.f32 %v1784, %v804
        %v1802 = vpack.c.bf16 %v1787, %v1786
        %v1803 = vpack.c.bf16 %v1789, %v1788
        %v1804 = vpack.c.bf16 %v1791, %v1790
        %v1805 = vpack.c.bf16 %v1793, %v1792
        %v1806 = vpack.c.bf16 %v1795, %v1794
        %v1807 = vpack.c.bf16 %v1797, %v1796
        %v1808 = vpack.c.bf16 %v1799, %v1798
        %v1809 = vpack.c.bf16 %v1801, %v1800
        %v1826 = vunpack.c.l.b16 %v855
        %v1827 = vunpack.c.l.b16 %v856
        %v1828 = vunpack.c.l.b16 %v857
        %v1829 = vunpack.c.l.b16 %v858
        %v1830 = vunpack.c.l.b16 %v859
        %v1831 = vunpack.c.l.b16 %v860
        %v1832 = vunpack.c.l.b16 %v861
        %v1833 = vunpack.c.l.b16 %v862
        %v1834 = vunpack.c.l.b16 %v863
        %v1835 = vunpack.c.l.b16 %v864
        %v1836 = vunpack.c.l.b16 %v865
        %v1837 = vunpack.c.l.b16 %v866
        %v1838 = vunpack.c.l.b16 %v867
        %v1839 = vunpack.c.l.b16 %v868
        %v1840 = vunpack.c.l.b16 %v869
        %v1841 = vunpack.c.l.b16 %v870
        %v1842 = vpack.c.b16 %v1827, %v1826
        %v1843 = vpack.c.b16 %v1829, %v1828
        %v1844 = vpack.c.b16 %v1831, %v1830
        %v1845 = vpack.c.b16 %v1833, %v1832
        %v1846 = vpack.c.b16 %v1835, %v1834
        %v1847 = vpack.c.b16 %v1837, %v1836
        %v1848 = vpack.c.b16 %v1839, %v1838
        %v1849 = vpack.c.b16 %v1841, %v1840
        %1858 = vxpose.xlu0.c.b16.start [1/8] %v1842, 128
        %1859 = vxpose.xlu0.c.b16.cont [2/8] %v1843, 128
        %1860 = vxpose.xlu0.c.b16.cont [3/8] %v1844, 128
        %1861 = vxpose.xlu0.c.b16.cont [4/8] %v1845, 128
        %1862 = vxpose.xlu0.c.b16.cont [5/8] %v1846, 128
        %1863 = vxpose.xlu0.c.b16.cont [6/8] %v1847, 128
        %1864 = vxpose.xlu0.c.b16.cont [7/8] %v1848, 128
        %1865 = vxpose.xlu0.c.b16.end [8/8] %v1849, 128
        %v1866 = vpop.trf.xlu0
        %v1867 = vpop.trf.xlu0
        %v1868 = vpop.trf.xlu0
        %v1869 = vpop.trf.xlu0
        %v1870 = vpop.trf.xlu0
        %v1871 = vpop.trf.xlu0
        %v1872 = vpop.trf.xlu0
        %v1873 = vpop.trf.xlu0
        %1874 = vmatprep.subr.bf16.mxu0 0
        %1875 = vmatpush1.bf16.msra.mxu0 %v1802
        %1876 = vmatprep.subr.bf16.mxu0 0
        %1877 = vmatpush1.bf16.msra.mxu0 %v1803
        %1878 = vmatprep.subr.bf16.mxu0 0
        %1879 = vmatpush1.bf16.msra.mxu0 %v1804
        %1880 = vmatprep.subr.bf16.mxu0 0
        %1881 = vmatpush1.bf16.msra.mxu0 %v1805
        %1882 = vmatprep.subr.bf16.mxu0 0
        %1883 = vmatpush1.bf16.msra.mxu0 %v1806
        %1884 = vmatprep.subr.bf16.mxu0 0
        %1885 = vmatpush1.bf16.msra.mxu0 %v1807
        %1886 = vmatprep.subr.bf16.mxu0 0
        %1887 = vmatpush1.bf16.msra.mxu0 %v1808
        %1888 = vmatprep.subr.bf16.mxu0 0
        %1889 = vmatpush1.bf16.msra.mxu0 %v1809
        %1890 = vmatprep.subr.bf16.mxu0 0
        %1891 = vmatpush1.bf16.msra.mxu0 0
        %1892 = vmatprep.subr.bf16.mxu0 0
        %1893 = vmatpush1.bf16.msra.mxu0 0
        %1894 = vmatprep.subr.bf16.mxu0 0
        %1895 = vmatpush1.bf16.msra.mxu0 0
        %1896 = vmatprep.subr.bf16.mxu0 0
        %1897 = vmatpush1.bf16.msra.mxu0 0
        %1898 = vmatprep.subr.bf16.mxu0 0
        %1899 = vmatpush1.bf16.msra.mxu0 0
        %1900 = vmatprep.subr.bf16.mxu0 0
        %1901 = vmatpush1.bf16.msra.mxu0 0
        %1902 = vmatprep.subr.bf16.mxu0 0
        %1903 = vmatpush1.bf16.msra.mxu0 0
        %1904 = vmatprep.subr.bf16.mxu0 0
        %1905 = vmatpush1.bf16.msra.mxu0 0
        %1906 = vmatprep.mubr.bf16.mxu0 0
        %1907 = vmatmul.mubr.bf16.gmra.mrb[0].mxu0 %v1866
        %v1908 = vpop.f32.mrb[0].mxu0
        %v1909 = vadd.f32 0.0, %v1908
        %v1910 = vpop.f32.mrb[0].mxu0
        %v1911 = vpop.f32.mrb[0].mxu0
        %v1912 = vadd.f32 0.0, %v1911
        %v1913 = vpop.f32.mrb[0].mxu0
        %1914 = vdwg.mxu0
        %1915 = vst.msk [vmem:[#allocation2] sm:$0xff] %vm517, %v1909
        %1916 = vst.msk [vmem:[#allocation2 + $0x8] sm:$0xff] %vm517, %v1912
        %p1917 = scmp.eq.s32.totalorder %s24, 3
        // Predicated region
        $region73: #{tpu_custom_call.1} parent=59 // pred_check
          %p1918 = pneg %p1917
        $region74: #{tpu_custom_call.1} parent=59 // pred_check_branch
          %1920 = sbr.rel (%p1918) target = $region76
        $region75: #{tpu_custom_call.1} parent=59 // pred_region
          %v1921 = vld [vmem:[#allocation2] sm:$0xff]
          %v1922 = vld [vmem:[#allocation2 + $0x8] sm:$0xff]
          %v1923 = vmul.f32 %v1921, 0.5
          %v1924 = vmul.f32 %v1922, 0.5
          %v1925 = vtanh.pop %v1923
          %v1926 = vtanh.pop %v1924
          %vm1927 = vcmp.gt.f32.partialorder %v1921, 0.0
          %vm1928 = vcmp.gt.f32.partialorder %v1922, 0.0
          %v1929 = vmul.f32 %v1925, 2.0
          %v1930 = vmul.f32 %v1926, 2.0
          %v1931 = vsub.f32 1.0, %v1925
          %v1932 = vsub.f32 1.0, %v1926
          %v1933 = vrcp.pop %v1931
          %v1934 = vrcp.pop %v1932
          %v1935 = vmul.f32 %v1929, %v1933
          %v1936 = vmul.f32 %v1930, %v1934
          %v1937 = vsel %vm1927, %v1921, %v1935
          %v1938 = vsel %vm1928, %v1922, %v1936
          %v1939 = vsel %vm517, %v1937, 0.0
          %1940 = vadd.xlane.f32.xlu0 %v1939
          %v1941 = vpop.xlane.xlu0 %1940
          %v1942 = vsel %vm517, %v1938, 0.0
          %1943 = vadd.xlane.f32.xlu0 %v1942
          %v1944 = vpop.xlane.xlu0 %1943
          %v1945 = vrcp.pop 32.0
          %v1946 = vmul.f32 %v1941, %v1945
          %v1947 = vmul.f32 %v1944, %v1945
          %v1948 = vsub.f32 %v1937, %v1946
          %v1949 = vsub.f32 %v1938, %v1947
          %v1950 = vmul.f32 %v1948, %v1948
          %v1951 = vmul.f32 %v1949, %v1949
          %v1952 = vsel %vm517, %v1950, 0.0
          %1953 = vadd.xlane.f32.xlu0 %v1952
          %v1954 = vpop.xlane.xlu0 %1953
          %v1955 = vsel %vm517, %v1951, 0.0
          %1956 = vadd.xlane.f32.xlu0 %v1955
          %v1957 = vpop.xlane.xlu0 %1956
          %v1958 = vmul.f32 %v1954, %v1945
          %v1959 = vmul.f32 %v1957, %v1945
          %v1960 = vadd.f32 %v1958, 1e-05
          %v1961 = vadd.f32 %v1959, 1e-05
          %v1962 = vrsqrt.pop %v1960
          %v1963 = vrsqrt.pop %v1961
          %v1964 = vmul.f32 %v1948, %v1962
          %v1965 = vmul.f32 %v1949, %v1963
          %v1966 = vld [vmem:[%s8] sm:$0x1]
          %v1968 = vlaneseq
          %v1969 = vshrl.u32 %v1968, 7
          %v1970 = vsub.s32 0, %v1969
          %v1971 = vrot.slane %v1966, %v1970
          %v1973 = vmul.f32 %v1964, %v1971
          %v1974 = vmul.f32 %v1965, %v1971
          %v1975 = vld [vmem:[%s9] sm:$0x1]
          %v1977 = vlaneseq
          %v1978 = vshrl.u32 %v1977, 7
          %v1979 = vsub.s32 0, %v1978
          %v1980 = vrot.slane %v1975, %v1979
          %v1982 = vadd.f32 %v1973, %v1980
          %v1983 = vadd.f32 %v1974, %v1980
          %1984 = vst.msk [vmem:[#allocation8] sm:$0xff] %vm517, %v1982
          %1985 = vst.msk [vmem:[#allocation8 + $0x8] sm:$0xff] %vm517, %v1983
        $region76: #{tpu_custom_call.1} parent=59 // pred_fallthru
          _
        // Predicated region
        $region77: #{tpu_custom_call.1} parent=59 // pred_check
          %p1986 = pneg %p262
        $region78: #{tpu_custom_call.1} parent=59 // pred_check_branch
          %1988 = sbr.rel (%p1986) target = $region80
        $region79: #{tpu_custom_call.1} parent=59 // pred_region
          %s1990 = ssub.s32 256, 256
          %1991 = vsyncadd [#allocation5], %s1990
          %s1992 = sshll.u32 [#allocation8], 4
          %s1993 = int_to_ptr.vmem [resolvable:$true] %s1992
          %1998 = dma.vmem_to_hbm [thread:$0]  %s1993, 256, %s10, [#allocation5], 128, 128, 8
        $region80: #{tpu_custom_call.1} parent=59 // pred_fallthru
          _
        // Predicated region
        $region81: #{tpu_custom_call.1} parent=59 // pred_check
          %p1999 = pneg %p262
        $region82: #{tpu_custom_call.1} parent=59 // pred_check_branch
          %2001 = sbr.rel (%p1999) target = $region84
        $region83: #{tpu_custom_call.1} parent=59 // pred_region
          %2002 = dma.done [#allocation5], 256
        $region84: #{tpu_custom_call.1} parent=59 // pred_fallthru
          _
      $region60: #{tpu_custom_call.1} parent=5 // pred_fallthru
        _
      %p2003 = scmp.le.s32.totalorder 2, %s19
      // Predicated region
      $region85: #{tpu_custom_call.1} parent=5 // pred_check
        %p2004 = pneg %p2003
      $region86: #{tpu_custom_call.1} parent=5 // pred_check_branch
        %2006 = sbr.rel (%p2004) target = $region88
      $region87: #{tpu_custom_call.1} parent=5 // pred_region
        %s2007 = ssub.s32 %s19, 2
      $region88: #{tpu_custom_call.1} parent=5 // pred_fallthru
        _
    $region6: #{tpu_custom_call.1} parent=1 // loop_footer
      %s23 = sadd.s32 1, %s19
    $region7: #{tpu_custom_call.1} parent=1 // loop_footer_branch
      %18 = sbr.rel target = $region3
    $region8: #{tpu_custom_call.1} parent=1 // loop_exit
      _
    %2008 = vsyncpa [#allocation4], 1
    %s2009 = scalar_lea.sflag [#allocation4], 1
    %2010 = vsyncpa %s2009, 1
    %2011 = vsyncpa [#allocation7], 1
    %2012 = vsyncpa [#allocation5], 1
    %s2013 = scalar_lea.sflag [#allocation5], 1
    %2014 = vsyncpa %s2013, 1

</llo_original>
